<compile_context>
chip_gen: v7x
topology: tpu7x:2x2x1
jax: 0.10.0
libtpu: 0.0.40
codegen_flags: <defaults>
</compile_context>

<pallas_src>
import jax
import jax.numpy as jnp
from jax import lax
from jax.experimental import pallas as pl
from jax.experimental.pallas import tpu as pltpu

LANE = 128
COMPUTE_DTYPE = jnp.bfloat16          # MXU-fed dtype; accumulation stays f32
_COMPILER_PARAMS = pltpu.CompilerParams(
    dimension_semantics=("arbitrary",),          # grid=(1,): nothing to shard
    vmem_limit_bytes=32 * 1024 * 1024)           # headroom even on v7x (64 MiB)


def _pad_lanes(w):
    """Zero-pad the output (last) dim of a weight matrix to a 128 multiple.

    Extra output columns are exactly zero, so downstream l2 norms and logits
    are numerically unchanged while feature stores / MXU N stay lane-dense.
    """
    n = w.shape[-1]
    pad = (-n) % LANE
    if pad == 0:
        return w
    return jnp.pad(w, ((0, 0), (0, pad)))


# --------------------- one-time parameter preparation ---------------------

def prepare_clip_params(params, context_length):
    """Fold / pad / cast weights once, outside the jitted forward.

    Valid only while the synthetic towers are purely linear (documented);
    with the real CLIP transformers these folds disappear and each tower
    becomes its own tiled matmul pipeline.
    """
    pe = params["patch_embed"].astype(jnp.float32)          # [Kp, width]
    vp = _pad_lanes(params["visual_proj"]).astype(jnp.float32)   # [width, Ep]
    te = params["token_embedding"].astype(jnp.float32)      # [vocab, width]
    tp = _pad_lanes(params["text_proj"]).astype(jnp.float32)     # [width, Ep]

    # TODO(synk): real CLIP visual/text transformer blocks (checkpoint .pt)
    # would sit between these two linear maps; the folds below then go away.
    w_img = pe @ vp                                          # [Kp, Ep]
    w_txt = (te @ tp) * (1.0 / float(context_length))        # 1/ctx mean fold

    return {
        "w_img": w_img.astype(COMPUTE_DTYPE),
        "w_txt": w_txt.astype(COMPUTE_DTYPE),
        "logit_scale": params["logit_scale"].astype(jnp.float32),  # raw log-scale
    }


# ------------------------- single fused forward kernel -------------------------

def _clip_fused_kernel(scale_ref, pooled_ref, tok_ref, w_img_ref, w_txt_ref,
                       o_ref):
    # ---- image tower (synthetic): pooled pixels @ (patch_embed @ visual_proj)
    pooled = pooled_ref[...]                                  # [B, Kp] f32
    img = jnp.dot(pooled.astype(w_img_ref.dtype), w_img_ref[...],
                  preferred_element_type=jnp.float32)         # [B, Ep] f32
    # TODO(synk): real ViT blocks (LayerNorm, attention, MLP, CLS token) need
    # the .pt checkpoint and would replace the single folded matmul above.

    # ---- text tower (synthetic): mean-of-gather as a counts @ W matmul
    tok = tok_ref[...]                                        # [T_pad, ctx] i32
    t_pad, ctx = tok_ref.shape
    vocab, _ = w_txt_ref.shape
    vocab_ids = lax.broadcasted_iota(jnp.int32, (t_pad, vocab), 1)
    counts = jnp.zeros((t_pad, vocab), jnp.float32)
    for c in range(ctx):                      # static, tiny (ctx compares on VPU)
        counts = counts + (tok[:, c:c + 1] == vocab_ids).astype(jnp.float32)
    # 1/ctx is folded into w_txt at prep time; counts are small exact ints.
    txt = jnp.dot(counts.astype(w_txt_ref.dtype), w_txt_ref[...],
                  preferred_element_type=jnp.float32)         # [T_pad, Ep] f32
    # TODO(synk): real CLIP text transformer + EOT-token pooling need the
    # checkpoint; mean pooling + linear projection used instead.

    # ---- F.normalize(dim=-1, eps=1e-12) + scaled logits
    # x / max(||x||, 1e-12)  ==  x * rsqrt(max(sumsq, 1e-24))   (exact)
    img_inv = lax.rsqrt(jnp.maximum(
        jnp.sum(img * img, axis=-1, keepdims=True), 1e-24))   # [B, 1]
    txt_inv = lax.rsqrt(jnp.maximum(
        jnp.sum(txt * txt, axis=-1, keepdims=True), 1e-24))   # [T_pad, 1]
    # exp(logit_scale) from the SMEM scalar, on the EUP via a [1,1] broadcast;
    # scale folded into the small [B, Ep] operand (not both logits matrices).
    scale = jnp.exp(jnp.full((1, 1), scale_ref[0], dtype=jnp.float32))
    img_s = img * (scale * img_inv)                           # [B, Ep]
    txt_n = txt * txt_inv                                     # [T_pad, Ep]
    # Single MXU matmul contracting the last dims directly (no .T relayout);
    # logits_per_text is the transpose, taken in the wrapper.
    o_ref[...] = lax.dot_general(
        img_s, txt_n, (((1,), (1,)), ((), ())),
        preferred_element_type=jnp.float32)                   # [B, T_pad]


def pallas_clip_forward(logit_scale, pooled_img, tokens_padded, w_img, w_txt):
    B, Kp = pooled_img.shape
    T_pad, ctx = tokens_padded.shape
    Kp2, Ep = w_img.shape
    vocab, Ep2 = w_txt.shape
    assert Kp == Kp2 and Ep == Ep2 and Ep % LANE == 0 and T_pad % LANE == 0
    scale = jnp.reshape(logit_scale.astype(jnp.float32), (1,))
    return pl.pallas_call(
        _clip_fused_kernel,
        out_shape=jax.ShapeDtypeStruct((B, T_pad), jnp.float32),
        grid=(1,),
        in_specs=[pl.BlockSpec(memory_space=pltpu.MemorySpace.SMEM),   # log scale
                  pl.BlockSpec((B, Kp), lambda i: (0, 0)),
                  pl.BlockSpec((T_pad, ctx), lambda i: (0, 0)),
                  pl.BlockSpec((Kp, Ep), lambda i: (0, 0)),
                  pl.BlockSpec((vocab, Ep), lambda i: (0, 0))],
        out_specs=pl.BlockSpec((B, T_pad), lambda i: (0, 0)),
        compiler_params=_COMPILER_PARAMS,
    )(scale, pooled_img, tokens_padded, w_img, w_txt)


# ---------------------------- CLIPRet_TTA.forward ----------------------------

def clip_ret_tta_forward(prepped, images, tokens, patch=16):
    B, C, H, W = images.shape
    p = patch
    Kp = C * p * p
    # Mean over the patch grid commutes with the linear patch embed: pool the
    # raw pixels directly (no 6-axis transpose, P-fold smaller kernel input),
    # in f32 (no pre-quantization of inputs).
    pooled = images.reshape(B, C, H // p, p, W // p, p).mean(axis=(2, 4))
    pooled = pooled.reshape(B, Kp).astype(jnp.float32)        # [B, Kp]

    # Pad the prompt axis to a lane multiple so the single logits store is
    # lane-dense; padded rows are sliced off below (exact).
    T, ctx = tokens.shape
    T_pad = ((T + LANE - 1) // LANE) * LANE
    tokens_padded = jnp.pad(tokens.astype(jnp.int32),
                            ((0, T_pad - T), (0, 0)))         # [T_pad, ctx]

    logits_padded = pallas_clip_forward(
        prepped["logit_scale"], pooled, tokens_padded,
        prepped["w_img"], prepped["w_txt"])                   # [B, T_pad]

    logits_per_image = logits_padded[:, :T]                   # [B, T]
    logits_per_text = logits_per_image.T                      # [T, B] (exact)
    return logits_per_image, logits_per_text


# ---------------------------- pure-JAX reference ----------------------------

def reference_forward(params, images, tokens, patch=16):
    B, C, H, W = images.shape
    p = patch
    P = (H // p) * (W // p)
    Kp = C * p * p
    patches = images.reshape(B, C, H // p, p, W // p, p)
    patches = patches.transpose(0, 2, 4, 1, 3, 5).reshape(B, P, Kp)
    img_feat = patches.mean(axis=1) @ params["patch_embed"] @ params["visual_proj"]
    emb = params["token_embedding"][tokens]                   # [T, ctx, width]
    txt_feat = emb.mean(axis=1) @ params["text_proj"]
    img_n = img_feat / jnp.maximum(
        jnp.linalg.norm(img_feat, axis=-1, keepdims=True), 1e-12)
    txt_n = txt_feat / jnp.maximum(
        jnp.linalg.norm(txt_feat, axis=-1, keepdims=True), 1e-12)
    s = jnp.exp(params["logit_scale"])
    li = s * img_n @ txt_n.T
    return li, li.T


# ---------------------------- main ----------------------------

if __name__ == "__main__":
    B, C, H, W = 2, 3, 32, 32          # small images, ViT-B/16-style patches
    patch = 16
    width = 128                        # synthetic tower width (lane multiple)
    embed_dim = 32                     # joint embedding dim (padded to 128)
    vocab = 64
    T, ctx = 4, 8                      # number of text prompts, context length

    key = jax.random.PRNGKey(0)
    k1, k2, k3, k4, k5, k6 = jax.random.split(key, 6)

    params = {
        "patch_embed": 0.02 * jax.random.normal(
            k1, (C * patch * patch, width), jnp.float32),
        "visual_proj": 0.02 * jax.random.normal(
            k2, (width, embed_dim), jnp.float32),
        "token_embedding": 0.02 * jax.random.normal(
            k3, (vocab, width), jnp.float32),
        "text_proj": 0.02 * jax.random.normal(
            k4, (width, embed_dim), jnp.float32),
        # CLIP init: logit_scale = log(1 / 0.07); forward uses exp()
        "logit_scale": jnp.asarray(jnp.log(1.0 / 0.07), jnp.float32),
    }

    images = jax.random.normal(k5, (B, C, H, W), jnp.float32)
    tokens = jax.random.randint(k6, (T, ctx), 0, vocab, dtype=jnp.int32)

    # One-time weight prep (fold / pad / cast) outside the jitted forward.
    prepped = prepare_clip_params(params, context_length=ctx)
    prepped = jax.tree_util.tree_map(jax.block_until_ready, prepped)

    fwd = jax.jit(clip_ret_tta_forward)
    logits_per_image, logits_per_text = fwd(prepped, images, tokens)
    jax.block_until_ready((logits_per_image, logits_per_text))

    ref_li, ref_lt = reference_forward(params, images, tokens, patch)

    assert logits_per_image.shape == (B, T)
    assert logits_per_text.shape == (T, B)
    assert bool(jnp.all(jnp.isfinite(logits_per_image)))
    assert bool(jnp.allclose(logits_per_image, logits_per_text.T, atol=1e-5))
    # bf16 MXU operands vs. f32 reference: generous but meaningful tolerance.
    assert bool(jnp.allclose(logits_per_image, ref_li, atol=0.5, rtol=0.05))
    print("KERNEL_OK")
</pallas_src>

<mosaic_0001>
module attributes {stable_mosaic.version = 11 : i64} {
  func.func @_clip_fused_kernel(%arg0: i32, %arg1: memref<1xf32, #tpu.memory_space<smem>>, %arg2: memref<2x768xf32, #tpu.memory_space<vmem>>, %arg3: memref<128x8xi32, #tpu.memory_space<vmem>>, %arg4: memref<768x128xbf16, #tpu.memory_space<vmem>>, %arg5: memref<64x128xbf16, #tpu.memory_space<vmem>>, %arg6: memref<2x128xf32, #tpu.memory_space<vmem>>) attributes {dimension_semantics = [#tpu.dimension_semantics<arbitrary>], iteration_bounds = array<i64: 1>, scalar_prefetch = 0 : i64, scratch_operands = 0 : i64, tpu.core_type = #tpu.core_type<tc>, window_params = [{transform_indices = @transform_0, window_bounds = array<i64: 1>}, {pipeline_mode = #tpu.pipeline_mode<synchronous>, transform_indices = @transform_1, window_bounds = array<i64: 2, 768>}, {pipeline_mode = #tpu.pipeline_mode<synchronous>, transform_indices = @transform_2, window_bounds = array<i64: 128, 8>}, {pipeline_mode = #tpu.pipeline_mode<synchronous>, transform_indices = @transform_3, window_bounds = array<i64: 768, 128>}, {pipeline_mode = #tpu.pipeline_mode<synchronous>, transform_indices = @transform_4, window_bounds = array<i64: 64, 128>}, {pipeline_mode = #tpu.pipeline_mode<synchronous>, transform_indices = @transform_5, window_bounds = array<i64: 2, 128>}]} {
    %c0 = arith.constant 0 : index
    %c0_0 = arith.constant 0 : index
    %0 = vector.load %arg2[%c0, %c0_0] : memref<2x768xf32, #tpu.memory_space<vmem>>, vector<2x768xf32>
    %1 = arith.truncf %0 : vector<2x768xf32> to vector<2x768xbf16>
    %c0_1 = arith.constant 0 : index
    %c0_2 = arith.constant 0 : index
    %2 = vector.load %arg4[%c0_1, %c0_2] : memref<768x128xbf16, #tpu.memory_space<vmem>>, vector<768x128xbf16>
    %cst = arith.constant dense<0.000000e+00> : vector<2x128xf32>
    %3 = tpu.matmul %1, %2, %cst {dimension_numbers = #tpu.dot_dimension_numbers<[1], [0], [0], [1], [0, 0, 1, 1], [], []>} : vector<2x768xbf16>, vector<768x128xbf16>, vector<2x128xf32> -> vector<2x128xf32>
    %c0_3 = arith.constant 0 : index
    %c0_4 = arith.constant 0 : index
    %4 = vector.load %arg3[%c0_3, %c0_4] : memref<128x8xi32, #tpu.memory_space<vmem>>, vector<128x8xi32>
    %5 = tpu.iota {dimensions = array<i32: 1>} : vector<128x64xi32>
    %cst_5 = arith.constant 0.000000e+00 : f32
    %6 = vector.broadcast %cst_5 : f32 to vector<128x64xf32>
    %7 = vector.extract_strided_slice %4 {offsets = [0, 0], sizes = [128, 1], strides = [1, 1]} : vector<128x8xi32> to vector<128x1xi32>
    %8 = vector.broadcast %7 : vector<128x1xi32> to vector<128x64xi32>
    %9 = arith.cmpi eq, %8, %5 : vector<128x64xi32>
    %10 = arith.extui %9 : vector<128x64xi1> to vector<128x64xi32>
    %11 = arith.sitofp %10 : vector<128x64xi32> to vector<128x64xf32>
    %12 = arith.addf %6, %11 : vector<128x64xf32>
    %13 = vector.extract_strided_slice %4 {offsets = [0, 1], sizes = [128, 1], strides = [1, 1]} : vector<128x8xi32> to vector<128x1xi32>
    %14 = vector.broadcast %13 : vector<128x1xi32> to vector<128x64xi32>
    %15 = arith.cmpi eq, %14, %5 : vector<128x64xi32>
    %16 = arith.extui %15 : vector<128x64xi1> to vector<128x64xi32>
    %17 = arith.sitofp %16 : vector<128x64xi32> to vector<128x64xf32>
    %18 = arith.addf %12, %17 : vector<128x64xf32>
    %19 = vector.extract_strided_slice %4 {offsets = [0, 2], sizes = [128, 1], strides = [1, 1]} : vector<128x8xi32> to vector<128x1xi32>
    %20 = vector.broadcast %19 : vector<128x1xi32> to vector<128x64xi32>
    %21 = arith.cmpi eq, %20, %5 : vector<128x64xi32>
    %22 = arith.extui %21 : vector<128x64xi1> to vector<128x64xi32>
    %23 = arith.sitofp %22 : vector<128x64xi32> to vector<128x64xf32>
    %24 = arith.addf %18, %23 : vector<128x64xf32>
    %25 = vector.extract_strided_slice %4 {offsets = [0, 3], sizes = [128, 1], strides = [1, 1]} : vector<128x8xi32> to vector<128x1xi32>
    %26 = vector.broadcast %25 : vector<128x1xi32> to vector<128x64xi32>
    %27 = arith.cmpi eq, %26, %5 : vector<128x64xi32>
    %28 = arith.extui %27 : vector<128x64xi1> to vector<128x64xi32>
    %29 = arith.sitofp %28 : vector<128x64xi32> to vector<128x64xf32>
    %30 = arith.addf %24, %29 : vector<128x64xf32>
    %31 = vector.extract_strided_slice %4 {offsets = [0, 4], sizes = [128, 1], strides = [1, 1]} : vector<128x8xi32> to vector<128x1xi32>
    %32 = vector.broadcast %31 : vector<128x1xi32> to vector<128x64xi32>
    %33 = arith.cmpi eq, %32, %5 : vector<128x64xi32>
    %34 = arith.extui %33 : vector<128x64xi1> to vector<128x64xi32>
    %35 = arith.sitofp %34 : vector<128x64xi32> to vector<128x64xf32>
    %36 = arith.addf %30, %35 : vector<128x64xf32>
    %37 = vector.extract_strided_slice %4 {offsets = [0, 5], sizes = [128, 1], strides = [1, 1]} : vector<128x8xi32> to vector<128x1xi32>
    %38 = vector.broadcast %37 : vector<128x1xi32> to vector<128x64xi32>
    %39 = arith.cmpi eq, %38, %5 : vector<128x64xi32>
    %40 = arith.extui %39 : vector<128x64xi1> to vector<128x64xi32>
    %41 = arith.sitofp %40 : vector<128x64xi32> to vector<128x64xf32>
    %42 = arith.addf %36, %41 : vector<128x64xf32>
    %43 = vector.extract_strided_slice %4 {offsets = [0, 6], sizes = [128, 1], strides = [1, 1]} : vector<128x8xi32> to vector<128x1xi32>
    %44 = vector.broadcast %43 : vector<128x1xi32> to vector<128x64xi32>
    %45 = arith.cmpi eq, %44, %5 : vector<128x64xi32>
    %46 = arith.extui %45 : vector<128x64xi1> to vector<128x64xi32>
    %47 = arith.sitofp %46 : vector<128x64xi32> to vector<128x64xf32>
    %48 = arith.addf %42, %47 : vector<128x64xf32>
    %49 = vector.extract_strided_slice %4 {offsets = [0, 7], sizes = [128, 1], strides = [1, 1]} : vector<128x8xi32> to vector<128x1xi32>
    %50 = vector.broadcast %49 : vector<128x1xi32> to vector<128x64xi32>
    %51 = arith.cmpi eq, %50, %5 : vector<128x64xi32>
    %52 = arith.extui %51 : vector<128x64xi1> to vector<128x64xi32>
    %53 = arith.sitofp %52 : vector<128x64xi32> to vector<128x64xf32>
    %54 = arith.addf %48, %53 : vector<128x64xf32>
    %55 = arith.truncf %54 : vector<128x64xf32> to vector<128x64xbf16>
    %c0_6 = arith.constant 0 : index
    %c0_7 = arith.constant 0 : index
    %56 = vector.load %arg5[%c0_6, %c0_7] : memref<64x128xbf16, #tpu.memory_space<vmem>>, vector<64x128xbf16>
    %cst_8 = arith.constant dense<0.000000e+00> : vector<128x128xf32>
    %57 = tpu.matmul %55, %56, %cst_8 {dimension_numbers = #tpu.dot_dimension_numbers<[1], [0], [0], [1], [0, 0, 1, 1], [], []>} : vector<128x64xbf16>, vector<64x128xbf16>, vector<128x128xf32> -> vector<128x128xf32>
    %58 = arith.mulf %3, %3 : vector<2x128xf32>
    %cst_9 = arith.constant dense<0.000000e+00> : vector<2xf32>
    %59 = vector.multi_reduction <add>, %58, %cst_9 [1] : vector<2x128xf32> to vector<2xf32>
    %60 = vector.shape_cast %59 : vector<2xf32> to vector<2x1xf32>
    %cst_10 = arith.constant 1.000000e-24 : f32
    %61 = vector.broadcast %cst_10 : f32 to vector<2x1xf32>
    %62 = arith.maximumf %60, %61 : vector<2x1xf32>
    %63 = math.rsqrt %62 : vector<2x1xf32>
    %64 = arith.mulf %57, %57 : vector<128x128xf32>
    %cst_11 = arith.constant dense<0.000000e+00> : vector<128xf32>
    %65 = vector.multi_reduction <add>, %64, %cst_11 [1] : vector<128x128xf32> to vector<128xf32>
    %66 = vector.shape_cast %65 : vector<128xf32> to vector<128x1xf32>
    %cst_12 = arith.constant 1.000000e-24 : f32
    %67 = vector.broadcast %cst_12 : f32 to vector<128x1xf32>
    %68 = arith.maximumf %66, %67 : vector<128x1xf32>
    %69 = math.rsqrt %68 : vector<128x1xf32>
    %c0_13 = arith.constant 0 : index
    %70 = memref.load %arg1[%c0_13] : memref<1xf32, #tpu.memory_space<smem>>
    %71 = vector.broadcast %70 : f32 to vector<1x1xf32>
    %72 = math.exp %71 : vector<1x1xf32>
    %73 = vector.broadcast %72 : vector<1x1xf32> to vector<2x1xf32>
    %74 = arith.mulf %73, %63 : vector<2x1xf32>
    %75 = vector.broadcast %74 : vector<2x1xf32> to vector<2x128xf32>
    %76 = arith.mulf %3, %75 : vector<2x128xf32>
    %77 = vector.broadcast %69 : vector<128x1xf32> to vector<128x128xf32>
    %78 = arith.mulf %57, %77 : vector<128x128xf32>
    %cst_14 = arith.constant dense<0.000000e+00> : vector<2x128xf32>
    %79 = tpu.matmul %76, %78, %cst_14 {dimension_numbers = #tpu.dot_dimension_numbers<[1], [1], [0], [0], [0, 0, 1, 0], [], []>} : vector<2x128xf32>, vector<128x128xf32>, vector<2x128xf32> -> vector<2x128xf32>
    %c0_15 = arith.constant 0 : index
    %c0_16 = arith.constant 0 : index
    %80 = vector.load %arg6[%c0_15, %c0_16] : memref<2x128xf32, #tpu.memory_space<vmem>>, vector<2x128xf32>
    tpu.vector_store %arg6[%c0_15, %c0_16], %79 {strides = array<i32>} : memref<2x128xf32, #tpu.memory_space<vmem>>, vector<2x128xf32>,
    return
  }
  func.func @transform_0(%arg0: i32) -> i32 {
    %c0_i32 = arith.constant 0 : i32
    %c0_i32_0 = arith.constant 0 : i32
    return %c0_i32 : i32
  }
  func.func @transform_1(%arg0: i32) -> (i32, i32) {
    %c0_i32 = arith.constant 0 : i32
    %c0_i32_0 = arith.constant 0 : i32
    %c0_i32_1 = arith.constant 0 : i32
    return %c0_i32, %c0_i32_0 : i32, i32
  }
  func.func @transform_2(%arg0: i32) -> (i32, i32) {
    %c0_i32 = arith.constant 0 : i32
    %c0_i32_0 = arith.constant 0 : i32
    %c0_i32_1 = arith.constant 0 : i32
    return %c0_i32, %c0_i32_0 : i32, i32
  }
  func.func @transform_3(%arg0: i32) -> (i32, i32) {
    %c0_i32 = arith.constant 0 : i32
    %c0_i32_0 = arith.constant 0 : i32
    %c0_i32_1 = arith.constant 0 : i32
    return %c0_i32, %c0_i32_0 : i32, i32
  }
  func.func @transform_4(%arg0: i32) -> (i32, i32) {
    %c0_i32 = arith.constant 0 : i32
    %c0_i32_0 = arith.constant 0 : i32
    %c0_i32_1 = arith.constant 0 : i32
    return %c0_i32, %c0_i32_0 : i32, i32
  }
  func.func @transform_5(%arg0: i32) -> (i32, i32) {
    %c0_i32 = arith.constant 0 : i32
    %c0_i32_0 = arith.constant 0 : i32
    %c0_i32_1 = arith.constant 0 : i32
    return %c0_i32, %c0_i32_0 : i32, i32
  }
}

</mosaic_0001>

<llo_original>
// kernel: clip_ret_tta_forward.1
$region0: #{clip_ret_tta_forward.1}
  #allocation0 [shape = 'u32[]', space=smem, size = 0x4, offset = 0x4, fixed_abs, tag = 'smem constant byte address 0x4 - core index']
  #allocation1 [shape = 'u32[144,128]{1,0:T(1,128)}', space=vmem, size = 0x12000, scoped, tag = 'internal scratch']
  #allocation2 [shape = 'f32[1]{0:T(128)S(6)}', space=smem, size = 0x200, scoped, tag = 'scoped memory for clip_ret_tta_forward.1']
  %s0 = inlined_call_operand.<no memory space> [shape: f32[1], index: 0, kind: input, shape index: {}]
  %s1 = inlined_call_operand.vmem [shape: f32[2,768], index: 1, kind: input, shape index: {}]
  %s2 = inlined_call_operand.vmem [shape: s32[128,8], index: 2, kind: input, shape index: {}]
  %s3 = inlined_call_operand.vmem [shape: bf16[768,128], index: 3, kind: input, shape index: {}]
  %s4 = inlined_call_operand.vmem [shape: bf16[64,128], index: 4, kind: input, shape index: {}]
  %s5 = inlined_call_operand.vmem [shape: f32[2,128], index: 5, kind: output, shape index: {}]
  %s6 = sld [smem:[#allocation0]]
  $region30: #{clip_ret_tta_forward.1} parent=0
    _
  %s8 = ssub.s32 1, %s6
  %s9 = scalar_select 0, %s8, %s6
  %10 = sst [smem:[#allocation2]] %s0
  // Predicated region
  $region2: #{clip_ret_tta_forward.1} parent=0 // pred_check
    _
  $region3: #{clip_ret_tta_forward.1} parent=0 // pred_check_branch
    %12 = sbr.rel (0) target = $region5
  $region4: #{clip_ret_tta_forward.1} parent=0 // pred_region
    _
  $region5: #{clip_ret_tta_forward.1} parent=0 // pred_fallthru
    _
  // Predicated region
  $region6: #{clip_ret_tta_forward.1} parent=0 // pred_check
    _
  $region7: #{clip_ret_tta_forward.1} parent=0 // pred_check_branch
    %14 = sbr.rel (0) target = $region9
  $region8: #{clip_ret_tta_forward.1} parent=0 // pred_region
    _
  $region9: #{clip_ret_tta_forward.1} parent=0 // pred_fallthru
    _
  // Predicated region
  $region10: #{clip_ret_tta_forward.1} parent=0 // pred_check
    _
  $region11: #{clip_ret_tta_forward.1} parent=0 // pred_check_branch
    %16 = sbr.rel (0) target = $region13
  $region12: #{clip_ret_tta_forward.1} parent=0 // pred_region
    _
  $region13: #{clip_ret_tta_forward.1} parent=0 // pred_fallthru
    _
  // Predicated region
  $region14: #{clip_ret_tta_forward.1} parent=0 // pred_check
    _
  $region15: #{clip_ret_tta_forward.1} parent=0 // pred_check_branch
    %18 = sbr.rel (0) target = $region17
  $region16: #{clip_ret_tta_forward.1} parent=0 // pred_region
    _
  $region17: #{clip_ret_tta_forward.1} parent=0 // pred_fallthru
    _
  // Predicated region
  $region18: #{clip_ret_tta_forward.1} parent=0 // pred_check
    _
  $region19: #{clip_ret_tta_forward.1} parent=0 // pred_check_branch
    %20 = sbr.rel (0) target = $region21
  $region20: #{clip_ret_tta_forward.1} parent=0 // pred_region
    _
  $region21: #{clip_ret_tta_forward.1} parent=0 // pred_fallthru
    _
  %v22 = vld [vmem:[%s1] sm:$0xff]
  %v23 = vld [vmem:[%s1 + $0x8] sm:$0xf]
  %v26 = vcombine.high %v22, %v22
  %v28 = vunpack.c.l.s4 1983009808
  %v29 = vunpack.c.0.s8 %v28
  %v30 = vlaneseq
  %v31 = vshrl.u32 %v30, 7
  %v32 = vsub.s32 %v29, %v31
  %v33 = vrot.slane %v22, %v32
  %v35 = vunpack.c.l.s4 1983009808
  %v36 = vunpack.c.0.s8 %v35
  %v37 = vlaneseq
  %v38 = vshrl.u32 %v37, 7
  %v39 = vsub.s32 %v36, %v38
  %v40 = vrot.slane %v26, %v39
  %v41 = vcombine.high %v33, %v33
  %v42 = vcombine.high %v40, %v40
  %v44 = vunpack.c.l.s4 1983009808
  %v45 = vunpack.c.0.s8 %v44
  %v46 = vlaneseq
  %v47 = vshrl.u32 %v46, 7
  %v48 = vsub.s32 %v45, %v47
  %v49 = vrot.slane %v23, %v48
  %v50 = vcombine.high %v49, %v49
  %v57 = vpack.c.bf16 %v33, %v33
  %v58 = vpack.c.bf16 %v41, %v41
  %v59 = vpack.c.bf16 %v40, %v40
  %v60 = vpack.c.bf16 %v42, %v42
  %v61 = vpack.c.bf16 %v49, %v49
  %v62 = vpack.c.bf16 %v50, %v50
  %v63 = vld [vmem:[%s3] sm:$0xf]
  %v64 = vld [vmem:[%s3 + $0x4] sm:$0xf]
  %v65 = vld [vmem:[%s3 + $0x8] sm:$0xf]
  %v66 = vld [vmem:[%s3 + $0xc] sm:$0xf]
  %v67 = vld [vmem:[%s3 + $0x10] sm:$0xf]
  %v68 = vld [vmem:[%s3 + $0x14] sm:$0xf]
  %v69 = vld [vmem:[%s3 + $0x18] sm:$0xf]
  %v70 = vld [vmem:[%s3 + $0x1c] sm:$0xf]
  %v71 = vld [vmem:[%s3 + $0x20] sm:$0xf]
  %v72 = vld [vmem:[%s3 + $0x24] sm:$0xf]
  %v73 = vld [vmem:[%s3 + $0x28] sm:$0xf]
  %v74 = vld [vmem:[%s3 + $0x2c] sm:$0xf]
  %v75 = vld [vmem:[%s3 + $0x30] sm:$0xf]
  %v76 = vld [vmem:[%s3 + $0x34] sm:$0xf]
  %v77 = vld [vmem:[%s3 + $0x38] sm:$0xf]
  %v78 = vld [vmem:[%s3 + $0x3c] sm:$0xf]
  %v79 = vld [vmem:[%s3 + $0x40] sm:$0xf]
  %v80 = vld [vmem:[%s3 + $0x44] sm:$0xf]
  %v81 = vld [vmem:[%s3 + $0x48] sm:$0xf]
  %v82 = vld [vmem:[%s3 + $0x4c] sm:$0xf]
  %v83 = vld [vmem:[%s3 + $0x50] sm:$0xf]
  %v84 = vld [vmem:[%s3 + $0x54] sm:$0xf]
  %v85 = vld [vmem:[%s3 + $0x58] sm:$0xf]
  %v86 = vld [vmem:[%s3 + $0x5c] sm:$0xf]
  %v87 = vld [vmem:[%s3 + $0x60] sm:$0xf]
  %v88 = vld [vmem:[%s3 + $0x64] sm:$0xf]
  %v89 = vld [vmem:[%s3 + $0x68] sm:$0xf]
  %v90 = vld [vmem:[%s3 + $0x6c] sm:$0xf]
  %v91 = vld [vmem:[%s3 + $0x70] sm:$0xf]
  %v92 = vld [vmem:[%s3 + $0x74] sm:$0xf]
  %v93 = vld [vmem:[%s3 + $0x78] sm:$0xf]
  %v94 = vld [vmem:[%s3 + $0x7c] sm:$0xf]
  %v95 = vld [vmem:[%s3 + $0x80] sm:$0xf]
  %v96 = vld [vmem:[%s3 + $0x84] sm:$0xf]
  %v97 = vld [vmem:[%s3 + $0x88] sm:$0xf]
  %v98 = vld [vmem:[%s3 + $0x8c] sm:$0xf]
  %v99 = vld [vmem:[%s3 + $0x90] sm:$0xf]
  %v100 = vld [vmem:[%s3 + $0x94] sm:$0xf]
  %v101 = vld [vmem:[%s3 + $0x98] sm:$0xf]
  %v102 = vld [vmem:[%s3 + $0x9c] sm:$0xf]
  %v103 = vld [vmem:[%s3 + $0xa0] sm:$0xf]
  %v104 = vld [vmem:[%s3 + $0xa4] sm:$0xf]
  %v105 = vld [vmem:[%s3 + $0xa8] sm:$0xf]
  %v106 = vld [vmem:[%s3 + $0xac] sm:$0xf]
  %v107 = vld [vmem:[%s3 + $0xb0] sm:$0xf]
  %v108 = vld [vmem:[%s3 + $0xb4] sm:$0xf]
  %v109 = vld [vmem:[%s3 + $0xb8] sm:$0xf]
  %v110 = vld [vmem:[%s3 + $0xbc] sm:$0xf]
  %v111 = vld [vmem:[%s3 + $0xc0] sm:$0xf]
  %v112 = vld [vmem:[%s3 + $0xc4] sm:$0xf]
  %v113 = vld [vmem:[%s3 + $0xc8] sm:$0xf]
  %v114 = vld [vmem:[%s3 + $0xcc] sm:$0xf]
  %v115 = vld [vmem:[%s3 + $0xd0] sm:$0xf]
  %v116 = vld [vmem:[%s3 + $0xd4] sm:$0xf]
  %v117 = vld [vmem:[%s3 + $0xd8] sm:$0xf]
  %v118 = vld [vmem:[%s3 + $0xdc] sm:$0xf]
  %v119 = vld [vmem:[%s3 + $0xe0] sm:$0xf]
  %v120 = vld [vmem:[%s3 + $0xe4] sm:$0xf]
  %v121 = vld [vmem:[%s3 + $0xe8] sm:$0xf]
  %v122 = vld [vmem:[%s3 + $0xec] sm:$0xf]
  %v123 = vld [vmem:[%s3 + $0xf0] sm:$0xf]
  %v124 = vld [vmem:[%s3 + $0xf4] sm:$0xf]
  %v125 = vld [vmem:[%s3 + $0xf8] sm:$0xf]
  %v126 = vld [vmem:[%s3 + $0xfc] sm:$0xf]
  %v127 = vld [vmem:[%s3 + $0x100] sm:$0xf]
  %v128 = vld [vmem:[%s3 + $0x104] sm:$0xf]
  %v129 = vld [vmem:[%s3 + $0x108] sm:$0xf]
  %v130 = vld [vmem:[%s3 + $0x10c] sm:$0xf]
  %v131 = vld [vmem:[%s3 + $0x110] sm:$0xf]
  %v132 = vld [vmem:[%s3 + $0x114] sm:$0xf]
  %v133 = vld [vmem:[%s3 + $0x118] sm:$0xf]
  %v134 = vld [vmem:[%s3 + $0x11c] sm:$0xf]
  %v135 = vld [vmem:[%s3 + $0x120] sm:$0xf]
  %v136 = vld [vmem:[%s3 + $0x124] sm:$0xf]
  %v137 = vld [vmem:[%s3 + $0x128] sm:$0xf]
  %v138 = vld [vmem:[%s3 + $0x12c] sm:$0xf]
  %v139 = vld [vmem:[%s3 + $0x130] sm:$0xf]
  %v140 = vld [vmem:[%s3 + $0x134] sm:$0xf]
  %v141 = vld [vmem:[%s3 + $0x138] sm:$0xf]
  %v142 = vld [vmem:[%s3 + $0x13c] sm:$0xf]
  %v143 = vld [vmem:[%s3 + $0x140] sm:$0xf]
  %v144 = vld [vmem:[%s3 + $0x144] sm:$0xf]
  %v145 = vld [vmem:[%s3 + $0x148] sm:$0xf]
  %v146 = vld [vmem:[%s3 + $0x14c] sm:$0xf]
  %v147 = vld [vmem:[%s3 + $0x150] sm:$0xf]
  %v148 = vld [vmem:[%s3 + $0x154] sm:$0xf]
  %v149 = vld [vmem:[%s3 + $0x158] sm:$0xf]
  %v150 = vld [vmem:[%s3 + $0x15c] sm:$0xf]
  %v151 = vld [vmem:[%s3 + $0x160] sm:$0xf]
  %v152 = vld [vmem:[%s3 + $0x164] sm:$0xf]
  %v153 = vld [vmem:[%s3 + $0x168] sm:$0xf]
  %v154 = vld [vmem:[%s3 + $0x16c] sm:$0xf]
  %v155 = vld [vmem:[%s3 + $0x170] sm:$0xf]
  %v156 = vld [vmem:[%s3 + $0x174] sm:$0xf]
  %v157 = vld [vmem:[%s3 + $0x178] sm:$0xf]
  %v158 = vld [vmem:[%s3 + $0x17c] sm:$0xf]
  %v255 = vunpack.c.l.b16 %v63
  %v256 = vunpack.c.l.b16 %v64
  %v257 = vunpack.c.l.b16 %v65
  %v258 = vunpack.c.l.b16 %v66
  %v259 = vunpack.c.l.b16 %v67
  %v260 = vunpack.c.l.b16 %v68
  %v261 = vunpack.c.l.b16 %v69
  %v262 = vunpack.c.l.b16 %v70
  %v263 = vunpack.c.l.b16 %v71
  %v264 = vunpack.c.l.b16 %v72
  %v265 = vunpack.c.l.b16 %v73
  %v266 = vunpack.c.l.b16 %v74
  %v267 = vunpack.c.l.b16 %v75
  %v268 = vunpack.c.l.b16 %v76
  %v269 = vunpack.c.l.b16 %v77
  %v270 = vunpack.c.l.b16 %v78
  %v271 = vunpack.c.l.b16 %v79
  %v272 = vunpack.c.l.b16 %v80
  %v273 = vunpack.c.l.b16 %v81
  %v274 = vunpack.c.l.b16 %v82
  %v275 = vunpack.c.l.b16 %v83
  %v276 = vunpack.c.l.b16 %v84
  %v277 = vunpack.c.l.b16 %v85
  %v278 = vunpack.c.l.b16 %v86
  %v279 = vunpack.c.l.b16 %v87
  %v280 = vunpack.c.l.b16 %v88
  %v281 = vunpack.c.l.b16 %v89
  %v282 = vunpack.c.l.b16 %v90
  %v283 = vunpack.c.l.b16 %v91
  %v284 = vunpack.c.l.b16 %v92
  %v285 = vunpack.c.l.b16 %v93
  %v286 = vunpack.c.l.b16 %v94
  %v287 = vunpack.c.l.b16 %v95
  %v288 = vunpack.c.l.b16 %v96
  %v289 = vunpack.c.l.b16 %v97
  %v290 = vunpack.c.l.b16 %v98
  %v291 = vunpack.c.l.b16 %v99
  %v292 = vunpack.c.l.b16 %v100
  %v293 = vunpack.c.l.b16 %v101
  %v294 = vunpack.c.l.b16 %v102
  %v295 = vunpack.c.l.b16 %v103
  %v296 = vunpack.c.l.b16 %v104
  %v297 = vunpack.c.l.b16 %v105
  %v298 = vunpack.c.l.b16 %v106
  %v299 = vunpack.c.l.b16 %v107
  %v300 = vunpack.c.l.b16 %v108
  %v301 = vunpack.c.l.b16 %v109
  %v302 = vunpack.c.l.b16 %v110
  %v303 = vunpack.c.l.b16 %v111
  %v304 = vunpack.c.l.b16 %v112
  %v305 = vunpack.c.l.b16 %v113
  %v306 = vunpack.c.l.b16 %v114
  %v307 = vunpack.c.l.b16 %v115
  %v308 = vunpack.c.l.b16 %v116
  %v309 = vunpack.c.l.b16 %v117
  %v310 = vunpack.c.l.b16 %v118
  %v311 = vunpack.c.l.b16 %v119
  %v312 = vunpack.c.l.b16 %v120
  %v313 = vunpack.c.l.b16 %v121
  %v314 = vunpack.c.l.b16 %v122
  %v315 = vunpack.c.l.b16 %v123
  %v316 = vunpack.c.l.b16 %v124
  %v317 = vunpack.c.l.b16 %v125
  %v318 = vunpack.c.l.b16 %v126
  %v319 = vunpack.c.l.b16 %v127
  %v320 = vunpack.c.l.b16 %v128
  %v321 = vunpack.c.l.b16 %v129
  %v322 = vunpack.c.l.b16 %v130
  %v323 = vunpack.c.l.b16 %v131
  %v324 = vunpack.c.l.b16 %v132
  %v325 = vunpack.c.l.b16 %v133
  %v326 = vunpack.c.l.b16 %v134
  %v327 = vunpack.c.l.b16 %v135
  %v328 = vunpack.c.l.b16 %v136
  %v329 = vunpack.c.l.b16 %v137
  %v330 = vunpack.c.l.b16 %v138
  %v331 = vunpack.c.l.b16 %v139
  %v332 = vunpack.c.l.b16 %v140
  %v333 = vunpack.c.l.b16 %v141
  %v334 = vunpack.c.l.b16 %v142
  %v335 = vunpack.c.l.b16 %v143
  %v336 = vunpack.c.l.b16 %v144
  %v337 = vunpack.c.l.b16 %v145
  %v338 = vunpack.c.l.b16 %v146
  %v339 = vunpack.c.l.b16 %v147
  %v340 = vunpack.c.l.b16 %v148
  %v341 = vunpack.c.l.b16 %v149
  %v342 = vunpack.c.l.b16 %v150
  %v343 = vunpack.c.l.b16 %v151
  %v344 = vunpack.c.l.b16 %v152
  %v345 = vunpack.c.l.b16 %v153
  %v346 = vunpack.c.l.b16 %v154
  %v347 = vunpack.c.l.b16 %v155
  %v348 = vunpack.c.l.b16 %v156
  %v349 = vunpack.c.l.b16 %v157
  %v350 = vunpack.c.l.b16 %v158
  %v351 = vpack.c.b16 %v256, %v255
  %v352 = vpack.c.b16 %v258, %v257
  %v353 = vpack.c.b16 %v260, %v259
  %v354 = vpack.c.b16 %v262, %v261
  %v355 = vpack.c.b16 %v264, %v263
  %v356 = vpack.c.b16 %v266, %v265
  %v357 = vpack.c.b16 %v268, %v267
  %v358 = vpack.c.b16 %v270, %v269
  %v359 = vpack.c.b16 %v272, %v271
  %v360 = vpack.c.b16 %v274, %v273
  %v361 = vpack.c.b16 %v276, %v275
  %v362 = vpack.c.b16 %v278, %v277
  %v363 = vpack.c.b16 %v280, %v279
  %v364 = vpack.c.b16 %v282, %v281
  %v365 = vpack.c.b16 %v284, %v283
  %v366 = vpack.c.b16 %v286, %v285
  %v367 = vpack.c.b16 %v288, %v287
  %v368 = vpack.c.b16 %v290, %v289
  %v369 = vpack.c.b16 %v292, %v291
  %v370 = vpack.c.b16 %v294, %v293
  %v371 = vpack.c.b16 %v296, %v295
  %v372 = vpack.c.b16 %v298, %v297
  %v373 = vpack.c.b16 %v300, %v299
  %v374 = vpack.c.b16 %v302, %v301
  %v375 = vpack.c.b16 %v304, %v303
  %v376 = vpack.c.b16 %v306, %v305
  %v377 = vpack.c.b16 %v308, %v307
  %v378 = vpack.c.b16 %v310, %v309
  %v379 = vpack.c.b16 %v312, %v311
  %v380 = vpack.c.b16 %v314, %v313
  %v381 = vpack.c.b16 %v316, %v315
  %v382 = vpack.c.b16 %v318, %v317
  %v383 = vpack.c.b16 %v320, %v319
  %v384 = vpack.c.b16 %v322, %v321
  %v385 = vpack.c.b16 %v324, %v323
  %v386 = vpack.c.b16 %v326, %v325
  %v387 = vpack.c.b16 %v328, %v327
  %v388 = vpack.c.b16 %v330, %v329
  %v389 = vpack.c.b16 %v332, %v331
  %v390 = vpack.c.b16 %v334, %v333
  %v391 = vpack.c.b16 %v336, %v335
  %v392 = vpack.c.b16 %v338, %v337
  %v393 = vpack.c.b16 %v340, %v339
  %v394 = vpack.c.b16 %v342, %v341
  %v395 = vpack.c.b16 %v344, %v343
  %v396 = vpack.c.b16 %v346, %v345
  %v397 = vpack.c.b16 %v348, %v347
  %v398 = vpack.c.b16 %v350, %v349
  %447 = vmatprep.subr.bf16.mxu0 0
  %448 = vmatpush1.bf16.msra.mxu0 %v351
  %449 = vmatprep.subr.bf16.mxu0 0
  %450 = vmatpush1.bf16.msra.mxu0 %v352
  %451 = vmatprep.subr.bf16.mxu0 0
  %452 = vmatpush1.bf16.msra.mxu0 %v353
  %453 = vmatprep.subr.bf16.mxu0 0
  %454 = vmatpush1.bf16.msra.mxu0 %v354
  %455 = vmatprep.subr.bf16.mxu0 0
  %456 = vmatpush1.bf16.msra.mxu0 %v355
  %457 = vmatprep.subr.bf16.mxu0 0
  %458 = vmatpush1.bf16.msra.mxu0 %v356
  %459 = vmatprep.subr.bf16.mxu0 0
  %460 = vmatpush1.bf16.msra.mxu0 %v357
  %461 = vmatprep.subr.bf16.mxu0 0
  %462 = vmatpush1.bf16.msra.mxu0 %v358
  %463 = vmatprep.subr.bf16.mxu0 0
  %464 = vmatpush1.bf16.msra.mxu0 %v359
  %465 = vmatprep.subr.bf16.mxu0 0
  %466 = vmatpush1.bf16.msra.mxu0 %v360
  %467 = vmatprep.subr.bf16.mxu0 0
  %468 = vmatpush1.bf16.msra.mxu0 %v361
  %469 = vmatprep.subr.bf16.mxu0 0
  %470 = vmatpush1.bf16.msra.mxu0 %v362
  %471 = vmatprep.subr.bf16.mxu0 0
  %472 = vmatpush1.bf16.msra.mxu0 %v363
  %473 = vmatprep.subr.bf16.mxu0 0
  %474 = vmatpush1.bf16.msra.mxu0 %v364
  %475 = vmatprep.subr.bf16.mxu0 0
  %476 = vmatpush1.bf16.msra.mxu0 %v365
  %477 = vmatprep.subr.bf16.mxu0 0
  %478 = vmatpush1.bf16.msra.mxu0 %v366
  %479 = vmatprep.mubr.bf16.mxu0 %v58
  %480 = vmatmul.mubr.bf16.gmra.mrb[0].mxu0 %v57
  %v481 = vpop.f32.mrb[0].mxu0
  %v482 = vadd.f32 0.0, %v481
  %v483 = vpop.f32.mrb[0].mxu0
  %v484 = vpop.f32.mrb[0].mxu0
  %v485 = vpop.f32.mrb[0].mxu0
  %486 = vdwg.mxu0
  %487 = vmatprep.subr.bf16.mxu0 0
  %488 = vmatpush1.bf16.msra.mxu0 %v367
  %489 = vmatprep.subr.bf16.mxu0 0
  %490 = vmatpush1.bf16.msra.mxu0 %v368
  %491 = vmatprep.subr.bf16.mxu0 0
  %492 = vmatpush1.bf16.msra.mxu0 %v369
  %493 = vmatprep.subr.bf16.mxu0 0
  %494 = vmatpush1.bf16.msra.mxu0 %v370
  %495 = vmatprep.subr.bf16.mxu0 0
  %496 = vmatpush1.bf16.msra.mxu0 %v371
  %497 = vmatprep.subr.bf16.mxu0 0
  %498 = vmatpush1.bf16.msra.mxu0 %v372
  %499 = vmatprep.subr.bf16.mxu0 0
  %500 = vmatpush1.bf16.msra.mxu0 %v373
  %501 = vmatprep.subr.bf16.mxu0 0
  %502 = vmatpush1.bf16.msra.mxu0 %v374
  %503 = vmatprep.subr.bf16.mxu0 0
  %504 = vmatpush1.bf16.msra.mxu0 %v375
  %505 = vmatprep.subr.bf16.mxu0 0
  %506 = vmatpush1.bf16.msra.mxu0 %v376
  %507 = vmatprep.subr.bf16.mxu0 0
  %508 = vmatpush1.bf16.msra.mxu0 %v377
  %509 = vmatprep.subr.bf16.mxu0 0
  %510 = vmatpush1.bf16.msra.mxu0 %v378
  %511 = vmatprep.subr.bf16.mxu0 0
  %512 = vmatpush1.bf16.msra.mxu0 %v379
  %513 = vmatprep.subr.bf16.mxu0 0
  %514 = vmatpush1.bf16.msra.mxu0 %v380
  %515 = vmatprep.subr.bf16.mxu0 0
  %516 = vmatpush1.bf16.msra.mxu0 %v381
  %517 = vmatprep.subr.bf16.mxu0 0
  %518 = vmatpush1.bf16.msra.mxu0 %v382
  %519 = vmatprep.mubr.bf16.mxu0 %v60
  %520 = vmatmul.mubr.bf16.gmra.mrb[0].mxu0 %v59
  %v521 = vpop.f32.mrb[0].mxu0
  %v522 = vadd.f32 %v482, %v521
  %v523 = vpop.f32.mrb[0].mxu0
  %v524 = vpop.f32.mrb[0].mxu0
  %v525 = vpop.f32.mrb[0].mxu0
  %526 = vdwg.mxu0
  %527 = vmatprep.subr.bf16.mxu0 0
  %528 = vmatpush1.bf16.msra.mxu0 %v383
  %529 = vmatprep.subr.bf16.mxu0 0
  %530 = vmatpush1.bf16.msra.mxu0 %v384
  %531 = vmatprep.subr.bf16.mxu0 0
  %532 = vmatpush1.bf16.msra.mxu0 %v385
  %533 = vmatprep.subr.bf16.mxu0 0
  %534 = vmatpush1.bf16.msra.mxu0 %v386
  %535 = vmatprep.subr.bf16.mxu0 0
  %536 = vmatpush1.bf16.msra.mxu0 %v387
  %537 = vmatprep.subr.bf16.mxu0 0
  %538 = vmatpush1.bf16.msra.mxu0 %v388
  %539 = vmatprep.subr.bf16.mxu0 0
  %540 = vmatpush1.bf16.msra.mxu0 %v389
  %541 = vmatprep.subr.bf16.mxu0 0
  %542 = vmatpush1.bf16.msra.mxu0 %v390
  %543 = vmatprep.subr.bf16.mxu0 0
  %544 = vmatpush1.bf16.msra.mxu0 %v391
  %545 = vmatprep.subr.bf16.mxu0 0
  %546 = vmatpush1.bf16.msra.mxu0 %v392
  %547 = vmatprep.subr.bf16.mxu0 0
  %548 = vmatpush1.bf16.msra.mxu0 %v393
  %549 = vmatprep.subr.bf16.mxu0 0
  %550 = vmatpush1.bf16.msra.mxu0 %v394
  %551 = vmatprep.subr.bf16.mxu0 0
  %552 = vmatpush1.bf16.msra.mxu0 %v395
  %553 = vmatprep.subr.bf16.mxu0 0
  %554 = vmatpush1.bf16.msra.mxu0 %v396
  %555 = vmatprep.subr.bf16.mxu0 0
  %556 = vmatpush1.bf16.msra.mxu0 %v397
  %557 = vmatprep.subr.bf16.mxu0 0
  %558 = vmatpush1.bf16.msra.mxu0 %v398
  %559 = vmatprep.mubr.bf16.mxu0 %v62
  %560 = vmatmul.mubr.bf16.gmra.mrb[0].mxu0 %v61
  %v561 = vpop.f32.mrb[0].mxu0
  %v562 = vadd.f32 %v522, %v561
  %v563 = vpop.f32.mrb[0].mxu0
  %v564 = vpop.f32.mrb[0].mxu0
  %v565 = vpop.f32.mrb[0].mxu0
  %566 = vdwg.mxu0
  %v567 = vld [vmem:[%s2] sm:$0xff]
  %v568 = vld [vmem:[%s2 + $0x8] sm:$0xff]
  %v569 = vld [vmem:[%s2 + $0x10] sm:$0xff]
  %v570 = vld [vmem:[%s2 + $0x18] sm:$0xff]
  %v571 = vld [vmem:[%s2 + $0x20] sm:$0xff]
  %v572 = vld [vmem:[%s2 + $0x28] sm:$0xff]
  %v573 = vld [vmem:[%s2 + $0x30] sm:$0xff]
  %v574 = vld [vmem:[%s2 + $0x38] sm:$0xff]
  %v575 = vld [vmem:[%s2 + $0x40] sm:$0xff]
  %v576 = vld [vmem:[%s2 + $0x48] sm:$0xff]
  %v577 = vld [vmem:[%s2 + $0x50] sm:$0xff]
  %v578 = vld [vmem:[%s2 + $0x58] sm:$0xff]
  %v579 = vld [vmem:[%s2 + $0x60] sm:$0xff]
  %v580 = vld [vmem:[%s2 + $0x68] sm:$0xff]
  %v581 = vld [vmem:[%s2 + $0x70] sm:$0xff]
  %v582 = vld [vmem:[%s2 + $0x78] sm:$0xff]
  %v583 = vlaneseq
  %v584 = vand.u32 %v583, 127
  %585 = vset.pattern.permute.xlu0 0
  %586 = vperm.xlu0 %585, %v567
  %v587 = vpop.permute.xlu0 %586
  %588 = vset.pattern.permute.xlu0 0
  %589 = vperm.xlu0 %588, %v568
  %v590 = vpop.permute.xlu0 %589
  %591 = vset.pattern.permute.xlu0 0
  %592 = vperm.xlu0 %591, %v569
  %v593 = vpop.permute.xlu0 %592
  %594 = vset.pattern.permute.xlu0 0
  %595 = vperm.xlu0 %594, %v570
  %v596 = vpop.permute.xlu0 %595
  %597 = vset.pattern.permute.xlu0 0
  %598 = vperm.xlu0 %597, %v571
  %v599 = vpop.permute.xlu0 %598
  %600 = vset.pattern.permute.xlu0 0
  %601 = vperm.xlu0 %600, %v572
  %v602 = vpop.permute.xlu0 %601
  %603 = vset.pattern.permute.xlu0 0
  %604 = vperm.xlu0 %603, %v573
  %v605 = vpop.permute.xlu0 %604
  %606 = vset.pattern.permute.xlu0 0
  %607 = vperm.xlu0 %606, %v574
  %v608 = vpop.permute.xlu0 %607
  %609 = vset.pattern.permute.xlu0 0
  %610 = vperm.xlu0 %609, %v575
  %v611 = vpop.permute.xlu0 %610
  %612 = vset.pattern.permute.xlu0 0
  %613 = vperm.xlu0 %612, %v576
  %v614 = vpop.permute.xlu0 %613
  %615 = vset.pattern.permute.xlu0 0
  %616 = vperm.xlu0 %615, %v577
  %v617 = vpop.permute.xlu0 %616
  %618 = vset.pattern.permute.xlu0 0
  %619 = vperm.xlu0 %618, %v578
  %v620 = vpop.permute.xlu0 %619
  %621 = vset.pattern.permute.xlu0 0
  %622 = vperm.xlu0 %621, %v579
  %v623 = vpop.permute.xlu0 %622
  %624 = vset.pattern.permute.xlu0 0
  %625 = vperm.xlu0 %624, %v580
  %v626 = vpop.permute.xlu0 %625
  %627 = vset.pattern.permute.xlu0 0
  %628 = vperm.xlu0 %627, %v581
  %v629 = vpop.permute.xlu0 %628
  %630 = vset.pattern.permute.xlu0 0
  %631 = vperm.xlu0 %630, %v582
  %v632 = vpop.permute.xlu0 %631
  %vm633 = vcmp.eq.s32.totalorder %v587, %v584
  %vm634 = vcmp.eq.s32.totalorder %v590, %v584
  %vm635 = vcmp.eq.s32.totalorder %v593, %v584
  %vm636 = vcmp.eq.s32.totalorder %v596, %v584
  %vm637 = vcmp.eq.s32.totalorder %v599, %v584
  %vm638 = vcmp.eq.s32.totalorder %v602, %v584
  %vm639 = vcmp.eq.s32.totalorder %v605, %v584
  %vm640 = vcmp.eq.s32.totalorder %v608, %v584
  %vm641 = vcmp.eq.s32.totalorder %v611, %v584
  %vm642 = vcmp.eq.s32.totalorder %v614, %v584
  %vm643 = vcmp.eq.s32.totalorder %v617, %v584
  %vm644 = vcmp.eq.s32.totalorder %v620, %v584
  %vm645 = vcmp.eq.s32.totalorder %v623, %v584
  %vm646 = vcmp.eq.s32.totalorder %v626, %v584
  %vm647 = vcmp.eq.s32.totalorder %v629, %v584
  %vm648 = vcmp.eq.s32.totalorder %v632, %v584
  %v649 = vsel %vm633, 1, 0
  %v650 = vsel %vm634, 1, 0
  %v651 = vsel %vm635, 1, 0
  %v652 = vsel %vm636, 1, 0
  %v653 = vsel %vm637, 1, 0
  %v654 = vsel %vm638, 1, 0
  %v655 = vsel %vm639, 1, 0
  %v656 = vsel %vm640, 1, 0
  %v657 = vsel %vm641, 1, 0
  %v658 = vsel %vm642, 1, 0
  %v659 = vsel %vm643, 1, 0
  %v660 = vsel %vm644, 1, 0
  %v661 = vsel %vm645, 1, 0
  %v662 = vsel %vm646, 1, 0
  %v663 = vsel %vm647, 1, 0
  %v664 = vsel %vm648, 1, 0
  %v665 = vcvt.s32.f32 %v649
  %v666 = vcvt.s32.f32 %v650
  %v667 = vcvt.s32.f32 %v651
  %v668 = vcvt.s32.f32 %v652
  %v669 = vcvt.s32.f32 %v653
  %v670 = vcvt.s32.f32 %v654
  %v671 = vcvt.s32.f32 %v655
  %v672 = vcvt.s32.f32 %v656
  %v673 = vcvt.s32.f32 %v657
  %v674 = vcvt.s32.f32 %v658
  %v675 = vcvt.s32.f32 %v659
  %v676 = vcvt.s32.f32 %v660
  %v677 = vcvt.s32.f32 %v661
  %v678 = vcvt.s32.f32 %v662
  %v679 = vcvt.s32.f32 %v663
  %v680 = vcvt.s32.f32 %v664
  %v681 = vadd.f32 %v665, 0.0
  %v682 = vadd.f32 %v666, 0.0
  %v683 = vadd.f32 %v667, 0.0
  %v684 = vadd.f32 %v668, 0.0
  %v685 = vadd.f32 %v669, 0.0
  %v686 = vadd.f32 %v670, 0.0
  %v687 = vadd.f32 %v671, 0.0
  %v688 = vadd.f32 %v672, 0.0
  %v689 = vadd.f32 %v673, 0.0
  %v690 = vadd.f32 %v674, 0.0
  %v691 = vadd.f32 %v675, 0.0
  %v692 = vadd.f32 %v676, 0.0
  %v693 = vadd.f32 %v677, 0.0
  %v694 = vadd.f32 %v678, 0.0
  %v695 = vadd.f32 %v679, 0.0
  %v696 = vadd.f32 %v680, 0.0
  %697 = vset.pattern.permute.xlu0 1
  %698 = vperm.xlu0 %697, %v567
  %v699 = vpop.permute.xlu0 %698
  %700 = vset.pattern.permute.xlu0 1
  %701 = vperm.xlu0 %700, %v568
  %v702 = vpop.permute.xlu0 %701
  %703 = vset.pattern.permute.xlu0 1
  %704 = vperm.xlu0 %703, %v569
  %v705 = vpop.permute.xlu0 %704
  %706 = vset.pattern.permute.xlu0 1
  %707 = vperm.xlu0 %706, %v570
  %v708 = vpop.permute.xlu0 %707
  %709 = vset.pattern.permute.xlu0 1
  %710 = vperm.xlu0 %709, %v571
  %v711 = vpop.permute.xlu0 %710
  %712 = vset.pattern.permute.xlu0 1
  %713 = vperm.xlu0 %712, %v572
  %v714 = vpop.permute.xlu0 %713
  %715 = vset.pattern.permute.xlu0 1
  %716 = vperm.xlu0 %715, %v573
  %v717 = vpop.permute.xlu0 %716
  %718 = vset.pattern.permute.xlu0 1
  %719 = vperm.xlu0 %718, %v574
  %v720 = vpop.permute.xlu0 %719
  %721 = vset.pattern.permute.xlu0 1
  %722 = vperm.xlu0 %721, %v575
  %v723 = vpop.permute.xlu0 %722
  %724 = vset.pattern.permute.xlu0 1
  %725 = vperm.xlu0 %724, %v576
  %v726 = vpop.permute.xlu0 %725
  %727 = vset.pattern.permute.xlu0 1
  %728 = vperm.xlu0 %727, %v577
  %v729 = vpop.permute.xlu0 %728
  %730 = vset.pattern.permute.xlu0 1
  %731 = vperm.xlu0 %730, %v578
  %v732 = vpop.permute.xlu0 %731
  %733 = vset.pattern.permute.xlu0 1
  %734 = vperm.xlu0 %733, %v579
  %v735 = vpop.permute.xlu0 %734
  %736 = vset.pattern.permute.xlu0 1
  %737 = vperm.xlu0 %736, %v580
  %v738 = vpop.permute.xlu0 %737
  %739 = vset.pattern.permute.xlu0 1
  %740 = vperm.xlu0 %739, %v581
  %v741 = vpop.permute.xlu0 %740
  %742 = vset.pattern.permute.xlu0 1
  %743 = vperm.xlu0 %742, %v582
  %v744 = vpop.permute.xlu0 %743
  %vm745 = vcmp.eq.s32.totalorder %v699, %v584
  %vm746 = vcmp.eq.s32.totalorder %v702, %v584
  %vm747 = vcmp.eq.s32.totalorder %v705, %v584
  %vm748 = vcmp.eq.s32.totalorder %v708, %v584
  %vm749 = vcmp.eq.s32.totalorder %v711, %v584
  %vm750 = vcmp.eq.s32.totalorder %v714, %v584
  %vm751 = vcmp.eq.s32.totalorder %v717, %v584
  %vm752 = vcmp.eq.s32.totalorder %v720, %v584
  %vm753 = vcmp.eq.s32.totalorder %v723, %v584
  %vm754 = vcmp.eq.s32.totalorder %v726, %v584
  %vm755 = vcmp.eq.s32.totalorder %v729, %v584
  %vm756 = vcmp.eq.s32.totalorder %v732, %v584
  %vm757 = vcmp.eq.s32.totalorder %v735, %v584
  %vm758 = vcmp.eq.s32.totalorder %v738, %v584
  %vm759 = vcmp.eq.s32.totalorder %v741, %v584
  %vm760 = vcmp.eq.s32.totalorder %v744, %v584
  %v761 = vsel %vm745, 1, 0
  %v762 = vsel %vm746, 1, 0
  %v763 = vsel %vm747, 1, 0
  %v764 = vsel %vm748, 1, 0
  %v765 = vsel %vm749, 1, 0
  %v766 = vsel %vm750, 1, 0
  %v767 = vsel %vm751, 1, 0
  %v768 = vsel %vm752, 1, 0
  %v769 = vsel %vm753, 1, 0
  %v770 = vsel %vm754, 1, 0
  %v771 = vsel %vm755, 1, 0
  %v772 = vsel %vm756, 1, 0
  %v773 = vsel %vm757, 1, 0
  %v774 = vsel %vm758, 1, 0
  %v775 = vsel %vm759, 1, 0
  %v776 = vsel %vm760, 1, 0
  %v777 = vcvt.s32.f32 %v761
  %v778 = vcvt.s32.f32 %v762
  %v779 = vcvt.s32.f32 %v763
  %v780 = vcvt.s32.f32 %v764
  %v781 = vcvt.s32.f32 %v765
  %v782 = vcvt.s32.f32 %v766
  %v783 = vcvt.s32.f32 %v767
  %v784 = vcvt.s32.f32 %v768
  %v785 = vcvt.s32.f32 %v769
  %v786 = vcvt.s32.f32 %v770
  %v787 = vcvt.s32.f32 %v771
  %v788 = vcvt.s32.f32 %v772
  %v789 = vcvt.s32.f32 %v773
  %v790 = vcvt.s32.f32 %v774
  %v791 = vcvt.s32.f32 %v775
  %v792 = vcvt.s32.f32 %v776
  %v793 = vadd.f32 %v681, %v777
  %v794 = vadd.f32 %v682, %v778
  %v795 = vadd.f32 %v683, %v779
  %v796 = vadd.f32 %v684, %v780
  %v797 = vadd.f32 %v685, %v781
  %v798 = vadd.f32 %v686, %v782
  %v799 = vadd.f32 %v687, %v783
  %v800 = vadd.f32 %v688, %v784
  %v801 = vadd.f32 %v689, %v785
  %v802 = vadd.f32 %v690, %v786
  %v803 = vadd.f32 %v691, %v787
  %v804 = vadd.f32 %v692, %v788
  %v805 = vadd.f32 %v693, %v789
  %v806 = vadd.f32 %v694, %v790
  %v807 = vadd.f32 %v695, %v791
  %v808 = vadd.f32 %v696, %v792
  %809 = vset.pattern.permute.xlu0 2
  %810 = vperm.xlu0 %809, %v567
  %v811 = vpop.permute.xlu0 %810
  %812 = vset.pattern.permute.xlu0 2
  %813 = vperm.xlu0 %812, %v568
  %v814 = vpop.permute.xlu0 %813
  %815 = vset.pattern.permute.xlu0 2
  %816 = vperm.xlu0 %815, %v569
  %v817 = vpop.permute.xlu0 %816
  %818 = vset.pattern.permute.xlu0 2
  %819 = vperm.xlu0 %818, %v570
  %v820 = vpop.permute.xlu0 %819
  %821 = vset.pattern.permute.xlu0 2
  %822 = vperm.xlu0 %821, %v571
  %v823 = vpop.permute.xlu0 %822
  %824 = vset.pattern.permute.xlu0 2
  %825 = vperm.xlu0 %824, %v572
  %v826 = vpop.permute.xlu0 %825
  %827 = vset.pattern.permute.xlu0 2
  %828 = vperm.xlu0 %827, %v573
  %v829 = vpop.permute.xlu0 %828
  %830 = vset.pattern.permute.xlu0 2
  %831 = vperm.xlu0 %830, %v574
  %v832 = vpop.permute.xlu0 %831
  %833 = vset.pattern.permute.xlu0 2
  %834 = vperm.xlu0 %833, %v575
  %v835 = vpop.permute.xlu0 %834
  %836 = vset.pattern.permute.xlu0 2
  %837 = vperm.xlu0 %836, %v576
  %v838 = vpop.permute.xlu0 %837
  %839 = vset.pattern.permute.xlu0 2
  %840 = vperm.xlu0 %839, %v577
  %v841 = vpop.permute.xlu0 %840
  %842 = vset.pattern.permute.xlu0 2
  %843 = vperm.xlu0 %842, %v578
  %v844 = vpop.permute.xlu0 %843
  %845 = vset.pattern.permute.xlu0 2
  %846 = vperm.xlu0 %845, %v579
  %v847 = vpop.permute.xlu0 %846
  %848 = vset.pattern.permute.xlu0 2
  %849 = vperm.xlu0 %848, %v580
  %v850 = vpop.permute.xlu0 %849
  %851 = vset.pattern.permute.xlu0 2
  %852 = vperm.xlu0 %851, %v581
  %v853 = vpop.permute.xlu0 %852
  %854 = vset.pattern.permute.xlu0 2
  %855 = vperm.xlu0 %854, %v582
  %v856 = vpop.permute.xlu0 %855
  %vm857 = vcmp.eq.s32.totalorder %v811, %v584
  %vm858 = vcmp.eq.s32.totalorder %v814, %v584
  %vm859 = vcmp.eq.s32.totalorder %v817, %v584
  %vm860 = vcmp.eq.s32.totalorder %v820, %v584
  %vm861 = vcmp.eq.s32.totalorder %v823, %v584
  %vm862 = vcmp.eq.s32.totalorder %v826, %v584
  %vm863 = vcmp.eq.s32.totalorder %v829, %v584
  %vm864 = vcmp.eq.s32.totalorder %v832, %v584
  %vm865 = vcmp.eq.s32.totalorder %v835, %v584
  %vm866 = vcmp.eq.s32.totalorder %v838, %v584
  %vm867 = vcmp.eq.s32.totalorder %v841, %v584
  %vm868 = vcmp.eq.s32.totalorder %v844, %v584
  %vm869 = vcmp.eq.s32.totalorder %v847, %v584
  %vm870 = vcmp.eq.s32.totalorder %v850, %v584
  %vm871 = vcmp.eq.s32.totalorder %v853, %v584
  %vm872 = vcmp.eq.s32.totalorder %v856, %v584
  %v873 = vsel %vm857, 1, 0
  %v874 = vsel %vm858, 1, 0
  %v875 = vsel %vm859, 1, 0
  %v876 = vsel %vm860, 1, 0
  %v877 = vsel %vm861, 1, 0
  %v878 = vsel %vm862, 1, 0
  %v879 = vsel %vm863, 1, 0
  %v880 = vsel %vm864, 1, 0
  %v881 = vsel %vm865, 1, 0
  %v882 = vsel %vm866, 1, 0
  %v883 = vsel %vm867, 1, 0
  %v884 = vsel %vm868, 1, 0
  %v885 = vsel %vm869, 1, 0
  %v886 = vsel %vm870, 1, 0
  %v887 = vsel %vm871, 1, 0
  %v888 = vsel %vm872, 1, 0
  %v889 = vcvt.s32.f32 %v873
  %v890 = vcvt.s32.f32 %v874
  %v891 = vcvt.s32.f32 %v875
  %v892 = vcvt.s32.f32 %v876
  %v893 = vcvt.s32.f32 %v877
  %v894 = vcvt.s32.f32 %v878
  %v895 = vcvt.s32.f32 %v879
  %v896 = vcvt.s32.f32 %v880
  %v897 = vcvt.s32.f32 %v881
  %v898 = vcvt.s32.f32 %v882
  %v899 = vcvt.s32.f32 %v883
  %v900 = vcvt.s32.f32 %v884
  %v901 = vcvt.s32.f32 %v885
  %v902 = vcvt.s32.f32 %v886
  %v903 = vcvt.s32.f32 %v887
  %v904 = vcvt.s32.f32 %v888
  %v905 = vadd.f32 %v793, %v889
  %v906 = vadd.f32 %v794, %v890
  %v907 = vadd.f32 %v795, %v891
  %v908 = vadd.f32 %v796, %v892
  %v909 = vadd.f32 %v797, %v893
  %v910 = vadd.f32 %v798, %v894
  %v911 = vadd.f32 %v799, %v895
  %v912 = vadd.f32 %v800, %v896
  %v913 = vadd.f32 %v801, %v897
  %v914 = vadd.f32 %v802, %v898
  %v915 = vadd.f32 %v803, %v899
  %v916 = vadd.f32 %v804, %v900
  %v917 = vadd.f32 %v805, %v901
  %v918 = vadd.f32 %v806, %v902
  %v919 = vadd.f32 %v807, %v903
  %v920 = vadd.f32 %v808, %v904
  %921 = vset.pattern.permute.xlu0 3
  %922 = vperm.xlu0 %921, %v567
  %v923 = vpop.permute.xlu0 %922
  %924 = vset.pattern.permute.xlu0 3
  %925 = vperm.xlu0 %924, %v568
  %v926 = vpop.permute.xlu0 %925
  %927 = vset.pattern.permute.xlu0 3
  %928 = vperm.xlu0 %927, %v569
  %v929 = vpop.permute.xlu0 %928
  %930 = vset.pattern.permute.xlu0 3
  %931 = vperm.xlu0 %930, %v570
  %v932 = vpop.permute.xlu0 %931
  %933 = vset.pattern.permute.xlu0 3
  %934 = vperm.xlu0 %933, %v571
  %v935 = vpop.permute.xlu0 %934
  %936 = vset.pattern.permute.xlu0 3
  %937 = vperm.xlu0 %936, %v572
  %v938 = vpop.permute.xlu0 %937
  %939 = vset.pattern.permute.xlu0 3
  %940 = vperm.xlu0 %939, %v573
  %v941 = vpop.permute.xlu0 %940
  %942 = vset.pattern.permute.xlu0 3
  %943 = vperm.xlu0 %942, %v574
  %v944 = vpop.permute.xlu0 %943
  %945 = vset.pattern.permute.xlu0 3
  %946 = vperm.xlu0 %945, %v575
  %v947 = vpop.permute.xlu0 %946
  %948 = vset.pattern.permute.xlu0 3
  %949 = vperm.xlu0 %948, %v576
  %v950 = vpop.permute.xlu0 %949
  %951 = vset.pattern.permute.xlu0 3
  %952 = vperm.xlu0 %951, %v577
  %v953 = vpop.permute.xlu0 %952
  %954 = vset.pattern.permute.xlu0 3
  %955 = vperm.xlu0 %954, %v578
  %v956 = vpop.permute.xlu0 %955
  %957 = vset.pattern.permute.xlu0 3
  %958 = vperm.xlu0 %957, %v579
  %v959 = vpop.permute.xlu0 %958
  %960 = vset.pattern.permute.xlu0 3
  %961 = vperm.xlu0 %960, %v580
  %v962 = vpop.permute.xlu0 %961
  %963 = vset.pattern.permute.xlu0 3
  %964 = vperm.xlu0 %963, %v581
  %v965 = vpop.permute.xlu0 %964
  %966 = vset.pattern.permute.xlu0 3
  %967 = vperm.xlu0 %966, %v582
  %v968 = vpop.permute.xlu0 %967
  %vm969 = vcmp.eq.s32.totalorder %v923, %v584
  %vm970 = vcmp.eq.s32.totalorder %v926, %v584
  %vm971 = vcmp.eq.s32.totalorder %v929, %v584
  %vm972 = vcmp.eq.s32.totalorder %v932, %v584
  %vm973 = vcmp.eq.s32.totalorder %v935, %v584
  %vm974 = vcmp.eq.s32.totalorder %v938, %v584
  %vm975 = vcmp.eq.s32.totalorder %v941, %v584
  %vm976 = vcmp.eq.s32.totalorder %v944, %v584
  %vm977 = vcmp.eq.s32.totalorder %v947, %v584
  %vm978 = vcmp.eq.s32.totalorder %v950, %v584
  %vm979 = vcmp.eq.s32.totalorder %v953, %v584
  %vm980 = vcmp.eq.s32.totalorder %v956, %v584
  %vm981 = vcmp.eq.s32.totalorder %v959, %v584
  %vm982 = vcmp.eq.s32.totalorder %v962, %v584
  %vm983 = vcmp.eq.s32.totalorder %v965, %v584
  %vm984 = vcmp.eq.s32.totalorder %v968, %v584
  %v985 = vsel %vm969, 1, 0
  %v986 = vsel %vm970, 1, 0
  %v987 = vsel %vm971, 1, 0
  %v988 = vsel %vm972, 1, 0
  %v989 = vsel %vm973, 1, 0
  %v990 = vsel %vm974, 1, 0
  %v991 = vsel %vm975, 1, 0
  %v992 = vsel %vm976, 1, 0
  %v993 = vsel %vm977, 1, 0
  %v994 = vsel %vm978, 1, 0
  %v995 = vsel %vm979, 1, 0
  %v996 = vsel %vm980, 1, 0
  %v997 = vsel %vm981, 1, 0
  %v998 = vsel %vm982, 1, 0
  %v999 = vsel %vm983, 1, 0
  %v1000 = vsel %vm984, 1, 0
  %v1001 = vcvt.s32.f32 %v985
  %v1002 = vcvt.s32.f32 %v986
  %v1003 = vcvt.s32.f32 %v987
  %v1004 = vcvt.s32.f32 %v988
  %v1005 = vcvt.s32.f32 %v989
  %v1006 = vcvt.s32.f32 %v990
  %v1007 = vcvt.s32.f32 %v991
  %v1008 = vcvt.s32.f32 %v992
  %v1009 = vcvt.s32.f32 %v993
  %v1010 = vcvt.s32.f32 %v994
  %v1011 = vcvt.s32.f32 %v995
  %v1012 = vcvt.s32.f32 %v996
  %v1013 = vcvt.s32.f32 %v997
  %v1014 = vcvt.s32.f32 %v998
  %v1015 = vcvt.s32.f32 %v999
  %v1016 = vcvt.s32.f32 %v1000
  %v1017 = vadd.f32 %v905, %v1001
  %v1018 = vadd.f32 %v906, %v1002
  %v1019 = vadd.f32 %v907, %v1003
  %v1020 = vadd.f32 %v908, %v1004
  %v1021 = vadd.f32 %v909, %v1005
  %v1022 = vadd.f32 %v910, %v1006
  %v1023 = vadd.f32 %v911, %v1007
  %v1024 = vadd.f32 %v912, %v1008
  %v1025 = vadd.f32 %v913, %v1009
  %v1026 = vadd.f32 %v914, %v1010
  %v1027 = vadd.f32 %v915, %v1011
  %v1028 = vadd.f32 %v916, %v1012
  %v1029 = vadd.f32 %v917, %v1013
  %v1030 = vadd.f32 %v918, %v1014
  %v1031 = vadd.f32 %v919, %v1015
  %v1032 = vadd.f32 %v920, %v1016
  %1033 = vset.pattern.permute.xlu0 4
  %1034 = vperm.xlu0 %1033, %v567
  %v1035 = vpop.permute.xlu0 %1034
  %1036 = vset.pattern.permute.xlu0 4
  %1037 = vperm.xlu0 %1036, %v568
  %v1038 = vpop.permute.xlu0 %1037
  %1039 = vset.pattern.permute.xlu0 4
  %1040 = vperm.xlu0 %1039, %v569
  %v1041 = vpop.permute.xlu0 %1040
  %1042 = vset.pattern.permute.xlu0 4
  %1043 = vperm.xlu0 %1042, %v570
  %v1044 = vpop.permute.xlu0 %1043
  %1045 = vset.pattern.permute.xlu0 4
  %1046 = vperm.xlu0 %1045, %v571
  %v1047 = vpop.permute.xlu0 %1046
  %1048 = vset.pattern.permute.xlu0 4
  %1049 = vperm.xlu0 %1048, %v572
  %v1050 = vpop.permute.xlu0 %1049
  %1051 = vset.pattern.permute.xlu0 4
  %1052 = vperm.xlu0 %1051, %v573
  %v1053 = vpop.permute.xlu0 %1052
  %1054 = vset.pattern.permute.xlu0 4
  %1055 = vperm.xlu0 %1054, %v574
  %v1056 = vpop.permute.xlu0 %1055
  %1057 = vset.pattern.permute.xlu0 4
  %1058 = vperm.xlu0 %1057, %v575
  %v1059 = vpop.permute.xlu0 %1058
  %1060 = vset.pattern.permute.xlu0 4
  %1061 = vperm.xlu0 %1060, %v576
  %v1062 = vpop.permute.xlu0 %1061
  %1063 = vset.pattern.permute.xlu0 4
  %1064 = vperm.xlu0 %1063, %v577
  %v1065 = vpop.permute.xlu0 %1064
  %1066 = vset.pattern.permute.xlu0 4
  %1067 = vperm.xlu0 %1066, %v578
  %v1068 = vpop.permute.xlu0 %1067
  %1069 = vset.pattern.permute.xlu0 4
  %1070 = vperm.xlu0 %1069, %v579
  %v1071 = vpop.permute.xlu0 %1070
  %1072 = vset.pattern.permute.xlu0 4
  %1073 = vperm.xlu0 %1072, %v580
  %v1074 = vpop.permute.xlu0 %1073
  %1075 = vset.pattern.permute.xlu0 4
  %1076 = vperm.xlu0 %1075, %v581
  %v1077 = vpop.permute.xlu0 %1076
  %1078 = vset.pattern.permute.xlu0 4
  %1079 = vperm.xlu0 %1078, %v582
  %v1080 = vpop.permute.xlu0 %1079
  %vm1081 = vcmp.eq.s32.totalorder %v1035, %v584
  %vm1082 = vcmp.eq.s32.totalorder %v1038, %v584
  %vm1083 = vcmp.eq.s32.totalorder %v1041, %v584
  %vm1084 = vcmp.eq.s32.totalorder %v1044, %v584
  %vm1085 = vcmp.eq.s32.totalorder %v1047, %v584
  %vm1086 = vcmp.eq.s32.totalorder %v1050, %v584
  %vm1087 = vcmp.eq.s32.totalorder %v1053, %v584
  %vm1088 = vcmp.eq.s32.totalorder %v1056, %v584
  %vm1089 = vcmp.eq.s32.totalorder %v1059, %v584
  %vm1090 = vcmp.eq.s32.totalorder %v1062, %v584
  %vm1091 = vcmp.eq.s32.totalorder %v1065, %v584
  %vm1092 = vcmp.eq.s32.totalorder %v1068, %v584
  %vm1093 = vcmp.eq.s32.totalorder %v1071, %v584
  %vm1094 = vcmp.eq.s32.totalorder %v1074, %v584
  %vm1095 = vcmp.eq.s32.totalorder %v1077, %v584
  %vm1096 = vcmp.eq.s32.totalorder %v1080, %v584
  %v1097 = vsel %vm1081, 1, 0
  %v1098 = vsel %vm1082, 1, 0
  %v1099 = vsel %vm1083, 1, 0
  %v1100 = vsel %vm1084, 1, 0
  %v1101 = vsel %vm1085, 1, 0
  %v1102 = vsel %vm1086, 1, 0
  %v1103 = vsel %vm1087, 1, 0
  %v1104 = vsel %vm1088, 1, 0
  %v1105 = vsel %vm1089, 1, 0
  %v1106 = vsel %vm1090, 1, 0
  %v1107 = vsel %vm1091, 1, 0
  %v1108 = vsel %vm1092, 1, 0
  %v1109 = vsel %vm1093, 1, 0
  %v1110 = vsel %vm1094, 1, 0
  %v1111 = vsel %vm1095, 1, 0
  %v1112 = vsel %vm1096, 1, 0
  %v1113 = vcvt.s32.f32 %v1097
  %v1114 = vcvt.s32.f32 %v1098
  %v1115 = vcvt.s32.f32 %v1099
  %v1116 = vcvt.s32.f32 %v1100
  %v1117 = vcvt.s32.f32 %v1101
  %v1118 = vcvt.s32.f32 %v1102
  %v1119 = vcvt.s32.f32 %v1103
  %v1120 = vcvt.s32.f32 %v1104
  %v1121 = vcvt.s32.f32 %v1105
  %v1122 = vcvt.s32.f32 %v1106
  %v1123 = vcvt.s32.f32 %v1107
  %v1124 = vcvt.s32.f32 %v1108
  %v1125 = vcvt.s32.f32 %v1109
  %v1126 = vcvt.s32.f32 %v1110
  %v1127 = vcvt.s32.f32 %v1111
  %v1128 = vcvt.s32.f32 %v1112
  %v1129 = vadd.f32 %v1017, %v1113
  %v1130 = vadd.f32 %v1018, %v1114
  %v1131 = vadd.f32 %v1019, %v1115
  %v1132 = vadd.f32 %v1020, %v1116
  %v1133 = vadd.f32 %v1021, %v1117
  %v1134 = vadd.f32 %v1022, %v1118
  %v1135 = vadd.f32 %v1023, %v1119
  %v1136 = vadd.f32 %v1024, %v1120
  %v1137 = vadd.f32 %v1025, %v1121
  %v1138 = vadd.f32 %v1026, %v1122
  %v1139 = vadd.f32 %v1027, %v1123
  %v1140 = vadd.f32 %v1028, %v1124
  %v1141 = vadd.f32 %v1029, %v1125
  %v1142 = vadd.f32 %v1030, %v1126
  %v1143 = vadd.f32 %v1031, %v1127
  %v1144 = vadd.f32 %v1032, %v1128
  %1145 = vset.pattern.permute.xlu0 5
  %1146 = vperm.xlu0 %1145, %v567
  %v1147 = vpop.permute.xlu0 %1146
  %1148 = vset.pattern.permute.xlu0 5
  %1149 = vperm.xlu0 %1148, %v568
  %v1150 = vpop.permute.xlu0 %1149
  %1151 = vset.pattern.permute.xlu0 5
  %1152 = vperm.xlu0 %1151, %v569
  %v1153 = vpop.permute.xlu0 %1152
  %1154 = vset.pattern.permute.xlu0 5
  %1155 = vperm.xlu0 %1154, %v570
  %v1156 = vpop.permute.xlu0 %1155
  %1157 = vset.pattern.permute.xlu0 5
  %1158 = vperm.xlu0 %1157, %v571
  %v1159 = vpop.permute.xlu0 %1158
  %1160 = vset.pattern.permute.xlu0 5
  %1161 = vperm.xlu0 %1160, %v572
  %v1162 = vpop.permute.xlu0 %1161
  %1163 = vset.pattern.permute.xlu0 5
  %1164 = vperm.xlu0 %1163, %v573
  %v1165 = vpop.permute.xlu0 %1164
  %1166 = vset.pattern.permute.xlu0 5
  %1167 = vperm.xlu0 %1166, %v574
  %v1168 = vpop.permute.xlu0 %1167
  %1169 = vset.pattern.permute.xlu0 5
  %1170 = vperm.xlu0 %1169, %v575
  %v1171 = vpop.permute.xlu0 %1170
  %1172 = vset.pattern.permute.xlu0 5
  %1173 = vperm.xlu0 %1172, %v576
  %v1174 = vpop.permute.xlu0 %1173
  %1175 = vset.pattern.permute.xlu0 5
  %1176 = vperm.xlu0 %1175, %v577
  %v1177 = vpop.permute.xlu0 %1176
  %1178 = vset.pattern.permute.xlu0 5
  %1179 = vperm.xlu0 %1178, %v578
  %v1180 = vpop.permute.xlu0 %1179
  %1181 = vset.pattern.permute.xlu0 5
  %1182 = vperm.xlu0 %1181, %v579
  %v1183 = vpop.permute.xlu0 %1182
  %1184 = vset.pattern.permute.xlu0 5
  %1185 = vperm.xlu0 %1184, %v580
  %v1186 = vpop.permute.xlu0 %1185
  %1187 = vset.pattern.permute.xlu0 5
  %1188 = vperm.xlu0 %1187, %v581
  %v1189 = vpop.permute.xlu0 %1188
  %1190 = vset.pattern.permute.xlu0 5
  %1191 = vperm.xlu0 %1190, %v582
  %v1192 = vpop.permute.xlu0 %1191
  %vm1193 = vcmp.eq.s32.totalorder %v1147, %v584
  %vm1194 = vcmp.eq.s32.totalorder %v1150, %v584
  %vm1195 = vcmp.eq.s32.totalorder %v1153, %v584
  %vm1196 = vcmp.eq.s32.totalorder %v1156, %v584
  %vm1197 = vcmp.eq.s32.totalorder %v1159, %v584
  %vm1198 = vcmp.eq.s32.totalorder %v1162, %v584
  %vm1199 = vcmp.eq.s32.totalorder %v1165, %v584
  %vm1200 = vcmp.eq.s32.totalorder %v1168, %v584
  %vm1201 = vcmp.eq.s32.totalorder %v1171, %v584
  %vm1202 = vcmp.eq.s32.totalorder %v1174, %v584
  %vm1203 = vcmp.eq.s32.totalorder %v1177, %v584
  %vm1204 = vcmp.eq.s32.totalorder %v1180, %v584
  %vm1205 = vcmp.eq.s32.totalorder %v1183, %v584
  %vm1206 = vcmp.eq.s32.totalorder %v1186, %v584
  %vm1207 = vcmp.eq.s32.totalorder %v1189, %v584
  %vm1208 = vcmp.eq.s32.totalorder %v1192, %v584
  %v1209 = vsel %vm1193, 1, 0
  %v1210 = vsel %vm1194, 1, 0
  %v1211 = vsel %vm1195, 1, 0
  %v1212 = vsel %vm1196, 1, 0
  %v1213 = vsel %vm1197, 1, 0
  %v1214 = vsel %vm1198, 1, 0
  %v1215 = vsel %vm1199, 1, 0
  %v1216 = vsel %vm1200, 1, 0
  %v1217 = vsel %vm1201, 1, 0
  %v1218 = vsel %vm1202, 1, 0
  %v1219 = vsel %vm1203, 1, 0
  %v1220 = vsel %vm1204, 1, 0
  %v1221 = vsel %vm1205, 1, 0
  %v1222 = vsel %vm1206, 1, 0
  %v1223 = vsel %vm1207, 1, 0
  %v1224 = vsel %vm1208, 1, 0
  %v1225 = vcvt.s32.f32 %v1209
  %v1226 = vcvt.s32.f32 %v1210
  %v1227 = vcvt.s32.f32 %v1211
  %v1228 = vcvt.s32.f32 %v1212
  %v1229 = vcvt.s32.f32 %v1213
  %v1230 = vcvt.s32.f32 %v1214
  %v1231 = vcvt.s32.f32 %v1215
  %v1232 = vcvt.s32.f32 %v1216
  %v1233 = vcvt.s32.f32 %v1217
  %v1234 = vcvt.s32.f32 %v1218
  %v1235 = vcvt.s32.f32 %v1219
  %v1236 = vcvt.s32.f32 %v1220
  %v1237 = vcvt.s32.f32 %v1221
  %v1238 = vcvt.s32.f32 %v1222
  %v1239 = vcvt.s32.f32 %v1223
  %v1240 = vcvt.s32.f32 %v1224
  %v1241 = vadd.f32 %v1129, %v1225
  %v1242 = vadd.f32 %v1130, %v1226
  %v1243 = vadd.f32 %v1131, %v1227
  %v1244 = vadd.f32 %v1132, %v1228
  %v1245 = vadd.f32 %v1133, %v1229
  %v1246 = vadd.f32 %v1134, %v1230
  %v1247 = vadd.f32 %v1135, %v1231
  %v1248 = vadd.f32 %v1136, %v1232
  %v1249 = vadd.f32 %v1137, %v1233
  %v1250 = vadd.f32 %v1138, %v1234
  %v1251 = vadd.f32 %v1139, %v1235
  %v1252 = vadd.f32 %v1140, %v1236
  %v1253 = vadd.f32 %v1141, %v1237
  %v1254 = vadd.f32 %v1142, %v1238
  %v1255 = vadd.f32 %v1143, %v1239
  %v1256 = vadd.f32 %v1144, %v1240
  %1257 = vset.pattern.permute.xlu0 6
  %1258 = vperm.xlu0 %1257, %v567
  %v1259 = vpop.permute.xlu0 %1258
  %1260 = vset.pattern.permute.xlu0 6
  %1261 = vperm.xlu0 %1260, %v568
  %v1262 = vpop.permute.xlu0 %1261
  %1263 = vset.pattern.permute.xlu0 6
  %1264 = vperm.xlu0 %1263, %v569
  %v1265 = vpop.permute.xlu0 %1264
  %1266 = vset.pattern.permute.xlu0 6
  %1267 = vperm.xlu0 %1266, %v570
  %v1268 = vpop.permute.xlu0 %1267
  %1269 = vset.pattern.permute.xlu0 6
  %1270 = vperm.xlu0 %1269, %v571
  %v1271 = vpop.permute.xlu0 %1270
  %1272 = vset.pattern.permute.xlu0 6
  %1273 = vperm.xlu0 %1272, %v572
  %v1274 = vpop.permute.xlu0 %1273
  %1275 = vset.pattern.permute.xlu0 6
  %1276 = vperm.xlu0 %1275, %v573
  %v1277 = vpop.permute.xlu0 %1276
  %1278 = vset.pattern.permute.xlu0 6
  %1279 = vperm.xlu0 %1278, %v574
  %v1280 = vpop.permute.xlu0 %1279
  %1281 = vset.pattern.permute.xlu0 6
  %1282 = vperm.xlu0 %1281, %v575
  %v1283 = vpop.permute.xlu0 %1282
  %1284 = vset.pattern.permute.xlu0 6
  %1285 = vperm.xlu0 %1284, %v576
  %v1286 = vpop.permute.xlu0 %1285
  %1287 = vset.pattern.permute.xlu0 6
  %1288 = vperm.xlu0 %1287, %v577
  %v1289 = vpop.permute.xlu0 %1288
  %1290 = vset.pattern.permute.xlu0 6
  %1291 = vperm.xlu0 %1290, %v578
  %v1292 = vpop.permute.xlu0 %1291
  %1293 = vset.pattern.permute.xlu0 6
  %1294 = vperm.xlu0 %1293, %v579
  %v1295 = vpop.permute.xlu0 %1294
  %1296 = vset.pattern.permute.xlu0 6
  %1297 = vperm.xlu0 %1296, %v580
  %v1298 = vpop.permute.xlu0 %1297
  %1299 = vset.pattern.permute.xlu0 6
  %1300 = vperm.xlu0 %1299, %v581
  %v1301 = vpop.permute.xlu0 %1300
  %1302 = vset.pattern.permute.xlu0 6
  %1303 = vperm.xlu0 %1302, %v582
  %v1304 = vpop.permute.xlu0 %1303
  %vm1305 = vcmp.eq.s32.totalorder %v1259, %v584
  %vm1306 = vcmp.eq.s32.totalorder %v1262, %v584
  %vm1307 = vcmp.eq.s32.totalorder %v1265, %v584
  %vm1308 = vcmp.eq.s32.totalorder %v1268, %v584
  %vm1309 = vcmp.eq.s32.totalorder %v1271, %v584
  %vm1310 = vcmp.eq.s32.totalorder %v1274, %v584
  %vm1311 = vcmp.eq.s32.totalorder %v1277, %v584
  %vm1312 = vcmp.eq.s32.totalorder %v1280, %v584
  %vm1313 = vcmp.eq.s32.totalorder %v1283, %v584
  %vm1314 = vcmp.eq.s32.totalorder %v1286, %v584
  %vm1315 = vcmp.eq.s32.totalorder %v1289, %v584
  %vm1316 = vcmp.eq.s32.totalorder %v1292, %v584
  %vm1317 = vcmp.eq.s32.totalorder %v1295, %v584
  %vm1318 = vcmp.eq.s32.totalorder %v1298, %v584
  %vm1319 = vcmp.eq.s32.totalorder %v1301, %v584
  %vm1320 = vcmp.eq.s32.totalorder %v1304, %v584
  %v1321 = vsel %vm1305, 1, 0
  %v1322 = vsel %vm1306, 1, 0
  %v1323 = vsel %vm1307, 1, 0
  %v1324 = vsel %vm1308, 1, 0
  %v1325 = vsel %vm1309, 1, 0
  %v1326 = vsel %vm1310, 1, 0
  %v1327 = vsel %vm1311, 1, 0
  %v1328 = vsel %vm1312, 1, 0
  %v1329 = vsel %vm1313, 1, 0
  %v1330 = vsel %vm1314, 1, 0
  %v1331 = vsel %vm1315, 1, 0
  %v1332 = vsel %vm1316, 1, 0
  %v1333 = vsel %vm1317, 1, 0
  %v1334 = vsel %vm1318, 1, 0
  %v1335 = vsel %vm1319, 1, 0
  %v1336 = vsel %vm1320, 1, 0
  %v1337 = vcvt.s32.f32 %v1321
  %v1338 = vcvt.s32.f32 %v1322
  %v1339 = vcvt.s32.f32 %v1323
  %v1340 = vcvt.s32.f32 %v1324
  %v1341 = vcvt.s32.f32 %v1325
  %v1342 = vcvt.s32.f32 %v1326
  %v1343 = vcvt.s32.f32 %v1327
  %v1344 = vcvt.s32.f32 %v1328
  %v1345 = vcvt.s32.f32 %v1329
  %v1346 = vcvt.s32.f32 %v1330
  %v1347 = vcvt.s32.f32 %v1331
  %v1348 = vcvt.s32.f32 %v1332
  %v1349 = vcvt.s32.f32 %v1333
  %v1350 = vcvt.s32.f32 %v1334
  %v1351 = vcvt.s32.f32 %v1335
  %v1352 = vcvt.s32.f32 %v1336
  %v1353 = vadd.f32 %v1241, %v1337
  %v1354 = vadd.f32 %v1242, %v1338
  %v1355 = vadd.f32 %v1243, %v1339
  %v1356 = vadd.f32 %v1244, %v1340
  %v1357 = vadd.f32 %v1245, %v1341
  %v1358 = vadd.f32 %v1246, %v1342
  %v1359 = vadd.f32 %v1247, %v1343
  %v1360 = vadd.f32 %v1248, %v1344
  %v1361 = vadd.f32 %v1249, %v1345
  %v1362 = vadd.f32 %v1250, %v1346
  %v1363 = vadd.f32 %v1251, %v1347
  %v1364 = vadd.f32 %v1252, %v1348
  %v1365 = vadd.f32 %v1253, %v1349
  %v1366 = vadd.f32 %v1254, %v1350
  %v1367 = vadd.f32 %v1255, %v1351
  %v1368 = vadd.f32 %v1256, %v1352
  %1369 = vset.pattern.permute.xlu0 7
  %1370 = vperm.xlu0 %1369, %v567
  %v1371 = vpop.permute.xlu0 %1370
  %1372 = vset.pattern.permute.xlu0 7
  %1373 = vperm.xlu0 %1372, %v568
  %v1374 = vpop.permute.xlu0 %1373
  %1375 = vset.pattern.permute.xlu0 7
  %1376 = vperm.xlu0 %1375, %v569
  %v1377 = vpop.permute.xlu0 %1376
  %1378 = vset.pattern.permute.xlu0 7
  %1379 = vperm.xlu0 %1378, %v570
  %v1380 = vpop.permute.xlu0 %1379
  %1381 = vset.pattern.permute.xlu0 7
  %1382 = vperm.xlu0 %1381, %v571
  %v1383 = vpop.permute.xlu0 %1382
  %1384 = vset.pattern.permute.xlu0 7
  %1385 = vperm.xlu0 %1384, %v572
  %v1386 = vpop.permute.xlu0 %1385
  %1387 = vset.pattern.permute.xlu0 7
  %1388 = vperm.xlu0 %1387, %v573
  %v1389 = vpop.permute.xlu0 %1388
  %1390 = vset.pattern.permute.xlu0 7
  %1391 = vperm.xlu0 %1390, %v574
  %v1392 = vpop.permute.xlu0 %1391
  %1393 = vset.pattern.permute.xlu0 7
  %1394 = vperm.xlu0 %1393, %v575
  %v1395 = vpop.permute.xlu0 %1394
  %1396 = vset.pattern.permute.xlu0 7
  %1397 = vperm.xlu0 %1396, %v576
  %v1398 = vpop.permute.xlu0 %1397
  %1399 = vset.pattern.permute.xlu0 7
  %1400 = vperm.xlu0 %1399, %v577
  %v1401 = vpop.permute.xlu0 %1400
  %1402 = vset.pattern.permute.xlu0 7
  %1403 = vperm.xlu0 %1402, %v578
  %v1404 = vpop.permute.xlu0 %1403
  %1405 = vset.pattern.permute.xlu0 7
  %1406 = vperm.xlu0 %1405, %v579
  %v1407 = vpop.permute.xlu0 %1406
  %1408 = vset.pattern.permute.xlu0 7
  %1409 = vperm.xlu0 %1408, %v580
  %v1410 = vpop.permute.xlu0 %1409
  %1411 = vset.pattern.permute.xlu0 7
  %1412 = vperm.xlu0 %1411, %v581
  %v1413 = vpop.permute.xlu0 %1412
  %1414 = vset.pattern.permute.xlu0 7
  %1415 = vperm.xlu0 %1414, %v582
  %v1416 = vpop.permute.xlu0 %1415
  %vm1417 = vcmp.eq.s32.totalorder %v1371, %v584
  %vm1418 = vcmp.eq.s32.totalorder %v1374, %v584
  %vm1419 = vcmp.eq.s32.totalorder %v1377, %v584
  %vm1420 = vcmp.eq.s32.totalorder %v1380, %v584
  %vm1421 = vcmp.eq.s32.totalorder %v1383, %v584
  %vm1422 = vcmp.eq.s32.totalorder %v1386, %v584
  %vm1423 = vcmp.eq.s32.totalorder %v1389, %v584
  %vm1424 = vcmp.eq.s32.totalorder %v1392, %v584
  %vm1425 = vcmp.eq.s32.totalorder %v1395, %v584
  %vm1426 = vcmp.eq.s32.totalorder %v1398, %v584
  %vm1427 = vcmp.eq.s32.totalorder %v1401, %v584
  %vm1428 = vcmp.eq.s32.totalorder %v1404, %v584
  %vm1429 = vcmp.eq.s32.totalorder %v1407, %v584
  %vm1430 = vcmp.eq.s32.totalorder %v1410, %v584
  %vm1431 = vcmp.eq.s32.totalorder %v1413, %v584
  %vm1432 = vcmp.eq.s32.totalorder %v1416, %v584
  %v1433 = vsel %vm1417, 1, 0
  %v1434 = vsel %vm1418, 1, 0
  %v1435 = vsel %vm1419, 1, 0
  %v1436 = vsel %vm1420, 1, 0
  %v1437 = vsel %vm1421, 1, 0
  %v1438 = vsel %vm1422, 1, 0
  %v1439 = vsel %vm1423, 1, 0
  %v1440 = vsel %vm1424, 1, 0
  %v1441 = vsel %vm1425, 1, 0
  %v1442 = vsel %vm1426, 1, 0
  %v1443 = vsel %vm1427, 1, 0
  %v1444 = vsel %vm1428, 1, 0
  %v1445 = vsel %vm1429, 1, 0
  %v1446 = vsel %vm1430, 1, 0
  %v1447 = vsel %vm1431, 1, 0
  %v1448 = vsel %vm1432, 1, 0
  %v1449 = vcvt.s32.f32 %v1433
  %v1450 = vcvt.s32.f32 %v1434
  %v1451 = vcvt.s32.f32 %v1435
  %v1452 = vcvt.s32.f32 %v1436
  %v1453 = vcvt.s32.f32 %v1437
  %v1454 = vcvt.s32.f32 %v1438
  %v1455 = vcvt.s32.f32 %v1439
  %v1456 = vcvt.s32.f32 %v1440
  %v1457 = vcvt.s32.f32 %v1441
  %v1458 = vcvt.s32.f32 %v1442
  %v1459 = vcvt.s32.f32 %v1443
  %v1460 = vcvt.s32.f32 %v1444
  %v1461 = vcvt.s32.f32 %v1445
  %v1462 = vcvt.s32.f32 %v1446
  %v1463 = vcvt.s32.f32 %v1447
  %v1464 = vcvt.s32.f32 %v1448
  %v1465 = vadd.f32 %v1353, %v1449
  %v1466 = vadd.f32 %v1354, %v1450
  %v1467 = vadd.f32 %v1355, %v1451
  %v1468 = vadd.f32 %v1356, %v1452
  %v1469 = vadd.f32 %v1357, %v1453
  %v1470 = vadd.f32 %v1358, %v1454
  %v1471 = vadd.f32 %v1359, %v1455
  %v1472 = vadd.f32 %v1360, %v1456
  %v1473 = vadd.f32 %v1361, %v1457
  %v1474 = vadd.f32 %v1362, %v1458
  %v1475 = vadd.f32 %v1363, %v1459
  %v1476 = vadd.f32 %v1364, %v1460
  %v1477 = vadd.f32 %v1365, %v1461
  %v1478 = vadd.f32 %v1366, %v1462
  %v1479 = vadd.f32 %v1367, %v1463
  %v1480 = vadd.f32 %v1368, %v1464
  %v1481 = vpack.c.bf16 %v1466, %v1465
  %v1482 = vpack.c.bf16 %v1468, %v1467
  %v1483 = vpack.c.bf16 %v1470, %v1469
  %v1484 = vpack.c.bf16 %v1472, %v1471
  %v1485 = vpack.c.bf16 %v1474, %v1473
  %v1486 = vpack.c.bf16 %v1476, %v1475
  %v1487 = vpack.c.bf16 %v1478, %v1477
  %v1488 = vpack.c.bf16 %v1480, %v1479
  %v1489 = vld [vmem:[%s4] sm:$0xf]
  %v1490 = vld [vmem:[%s4 + $0x4] sm:$0xf]
  %v1491 = vld [vmem:[%s4 + $0x8] sm:$0xf]
  %v1492 = vld [vmem:[%s4 + $0xc] sm:$0xf]
  %v1493 = vld [vmem:[%s4 + $0x10] sm:$0xf]
  %v1494 = vld [vmem:[%s4 + $0x14] sm:$0xf]
  %v1495 = vld [vmem:[%s4 + $0x18] sm:$0xf]
  %v1496 = vld [vmem:[%s4 + $0x1c] sm:$0xf]
  %v1505 = vunpack.c.l.b16 %v1489
  %v1506 = vunpack.c.l.b16 %v1490
  %v1507 = vunpack.c.l.b16 %v1491
  %v1508 = vunpack.c.l.b16 %v1492
  %v1509 = vunpack.c.l.b16 %v1493
  %v1510 = vunpack.c.l.b16 %v1494
  %v1511 = vunpack.c.l.b16 %v1495
  %v1512 = vunpack.c.l.b16 %v1496
  %v1513 = vpack.c.b16 %v1506, %v1505
  %v1514 = vpack.c.b16 %v1508, %v1507
  %v1515 = vpack.c.b16 %v1510, %v1509
  %v1516 = vpack.c.b16 %v1512, %v1511
  %vm1521 = vcmask 523264
  %v1523 = vsel %vm1521, %v1481, 0
  %v1526 = vsel %vm1521, %v1482, 0
  %v1529 = vsel %vm1521, %v1483, 0
  %v1532 = vsel %vm1521, %v1484, 0
  %v1535 = vsel %vm1521, %v1485, 0
  %v1538 = vsel %vm1521, %v1486, 0
  %v1541 = vsel %vm1521, %v1487, 0
  %v1544 = vsel %vm1521, %v1488, 0
  %1546 = vmatprep.subr.bf16.mxu0 0
  %1547 = vmatpush1.bf16.msra.mxu0 %v1513
  %1548 = vmatprep.subr.bf16.mxu0 0
  %1549 = vmatpush1.bf16.msra.mxu0 %v1514
  %1550 = vmatprep.subr.bf16.mxu0 0
  %1551 = vmatpush1.bf16.msra.mxu0 %v1515
  %1552 = vmatprep.subr.bf16.mxu0 0
  %1553 = vmatpush1.bf16.msra.mxu0 %v1516
  %1554 = vmatprep.subr.bf16.mxu0 0
  %1555 = vmatpush1.bf16.msra.mxu0 0
  %1556 = vmatprep.subr.bf16.mxu0 0
  %1557 = vmatpush1.bf16.msra.mxu0 0
  %1558 = vmatprep.subr.bf16.mxu0 0
  %1559 = vmatpush1.bf16.msra.mxu0 0
  %1560 = vmatprep.subr.bf16.mxu0 0
  %1561 = vmatpush1.bf16.msra.mxu0 0
  %1562 = vmatprep.subr.bf16.mxu0 0
  %1563 = vmatpush1.bf16.msra.mxu0 0
  %1564 = vmatprep.subr.bf16.mxu0 0
  %1565 = vmatpush1.bf16.msra.mxu0 0
  %1566 = vmatprep.subr.bf16.mxu0 0
  %1567 = vmatpush1.bf16.msra.mxu0 0
  %1568 = vmatprep.subr.bf16.mxu0 0
  %1569 = vmatpush1.bf16.msra.mxu0 0
  %1570 = vmatprep.subr.bf16.mxu0 0
  %1571 = vmatpush1.bf16.msra.mxu0 0
  %1572 = vmatprep.subr.bf16.mxu0 0
  %1573 = vmatpush1.bf16.msra.mxu0 0
  %1574 = vmatprep.subr.bf16.mxu0 0
  %1575 = vmatpush1.bf16.msra.mxu0 0
  %1576 = vmatprep.subr.bf16.mxu0 0
  %1577 = vmatpush1.bf16.msra.mxu0 0
  %1578 = vmatprep.mubr.bf16.mxu0 0
  %1579 = vmatmul.mubr.bf16.gmra.mrb[0].mxu0 %v1523
  %v1580 = vpop.f32.mrb[0].mxu0
  %v1581 = vadd.f32 0.0, %v1580
  %v1582 = vpop.f32.mrb[0].mxu0
  %v1583 = vpop.f32.mrb[0].mxu0
  %v1584 = vadd.f32 0.0, %v1583
  %v1585 = vpop.f32.mrb[0].mxu0
  %1586 = vmatprep.mubr.bf16.mxu0 0
  %1587 = vmatmul.mubr.bf16.gmra.mrb[0].mxu0 %v1526
  %v1588 = vpop.f32.mrb[0].mxu0
  %v1589 = vadd.f32 0.0, %v1588
  %v1590 = vpop.f32.mrb[0].mxu0
  %v1591 = vpop.f32.mrb[0].mxu0
  %v1592 = vadd.f32 0.0, %v1591
  %v1593 = vpop.f32.mrb[0].mxu0
  %1594 = vmatprep.mubr.bf16.mxu0 0
  %1595 = vmatmul.mubr.bf16.gmra.mrb[0].mxu0 %v1529
  %v1596 = vpop.f32.mrb[0].mxu0
  %v1597 = vadd.f32 0.0, %v1596
  %v1598 = vpop.f32.mrb[0].mxu0
  %v1599 = vpop.f32.mrb[0].mxu0
  %v1600 = vadd.f32 0.0, %v1599
  %v1601 = vpop.f32.mrb[0].mxu0
  %1602 = vmatprep.mubr.bf16.mxu0 0
  %1603 = vmatmul.mubr.bf16.gmra.mrb[0].mxu0 %v1532
  %v1604 = vpop.f32.mrb[0].mxu0
  %v1605 = vadd.f32 0.0, %v1604
  %v1606 = vpop.f32.mrb[0].mxu0
  %v1607 = vpop.f32.mrb[0].mxu0
  %v1608 = vadd.f32 0.0, %v1607
  %v1609 = vpop.f32.mrb[0].mxu0
  %1610 = vmatprep.mubr.bf16.mxu0 0
  %1611 = vmatmul.mubr.bf16.gmra.mrb[0].mxu0 %v1535
  %v1612 = vpop.f32.mrb[0].mxu0
  %v1613 = vadd.f32 0.0, %v1612
  %v1614 = vpop.f32.mrb[0].mxu0
  %v1615 = vpop.f32.mrb[0].mxu0
  %v1616 = vadd.f32 0.0, %v1615
  %v1617 = vpop.f32.mrb[0].mxu0
  %1618 = vmatprep.mubr.bf16.mxu0 0
  %1619 = vmatmul.mubr.bf16.gmra.mrb[0].mxu0 %v1538
  %v1620 = vpop.f32.mrb[0].mxu0
  %v1621 = vadd.f32 0.0, %v1620
  %v1622 = vpop.f32.mrb[0].mxu0
  %v1623 = vpop.f32.mrb[0].mxu0
  %v1624 = vadd.f32 0.0, %v1623
  %v1625 = vpop.f32.mrb[0].mxu0
  %1626 = vmatprep.mubr.bf16.mxu0 0
  %1627 = vmatmul.mubr.bf16.gmra.mrb[0].mxu0 %v1541
  %v1628 = vpop.f32.mrb[0].mxu0
  %v1629 = vadd.f32 0.0, %v1628
  %v1630 = vpop.f32.mrb[0].mxu0
  %v1631 = vpop.f32.mrb[0].mxu0
  %v1632 = vadd.f32 0.0, %v1631
  %v1633 = vpop.f32.mrb[0].mxu0
  %1634 = vmatprep.mubr.bf16.mxu0 0
  %1635 = vmatmul.mubr.bf16.gmra.mrb[0].mxu0 %v1544
  %v1636 = vpop.f32.mrb[0].mxu0
  %v1637 = vadd.f32 0.0, %v1636
  %v1638 = vpop.f32.mrb[0].mxu0
  %v1639 = vpop.f32.mrb[0].mxu0
  %v1640 = vadd.f32 0.0, %v1639
  %v1641 = vpop.f32.mrb[0].mxu0
  %1642 = vdwg.mxu0
  %v1643 = vmul.f32 %v562, %v562
  %vm1644 = vcmask 1041408
  %v1645 = vsel %vm1644, %v1643, 0.0
  %1646 = vadd.xlane.f32.xlu0 %v1645
  %v1647 = vpop.xlane.xlu0 %1646
  %v1648 = vmax.f32 %v1647, 1e-24
  %v1649 = vrsqrt.pop %v1648
  %v1650 = vmul.f32 %v1581, %v1581
  %v1651 = vmul.f32 %v1584, %v1584
  %v1652 = vmul.f32 %v1589, %v1589
  %v1653 = vmul.f32 %v1592, %v1592
  %v1654 = vmul.f32 %v1597, %v1597
  %v1655 = vmul.f32 %v1600, %v1600
  %v1656 = vmul.f32 %v1605, %v1605
  %v1657 = vmul.f32 %v1608, %v1608
  %v1658 = vmul.f32 %v1613, %v1613
  %v1659 = vmul.f32 %v1616, %v1616
  %v1660 = vmul.f32 %v1621, %v1621
  %v1661 = vmul.f32 %v1624, %v1624
  %v1662 = vmul.f32 %v1629, %v1629
  %v1663 = vmul.f32 %v1632, %v1632
  %v1664 = vmul.f32 %v1637, %v1637
  %v1665 = vmul.f32 %v1640, %v1640
  %1666 = vadd.xlane.f32.xlu0 %v1650
  %v1667 = vpop.xlane.xlu0 %1666
  %1668 = vadd.xlane.f32.xlu0 %v1651
  %v1669 = vpop.xlane.xlu0 %1668
  %1670 = vadd.xlane.f32.xlu0 %v1652
  %v1671 = vpop.xlane.xlu0 %1670
  %1672 = vadd.xlane.f32.xlu0 %v1653
  %v1673 = vpop.xlane.xlu0 %1672
  %1674 = vadd.xlane.f32.xlu0 %v1654
  %v1675 = vpop.xlane.xlu0 %1674
  %1676 = vadd.xlane.f32.xlu0 %v1655
  %v1677 = vpop.xlane.xlu0 %1676
  %1678 = vadd.xlane.f32.xlu0 %v1656
  %v1679 = vpop.xlane.xlu0 %1678
  %1680 = vadd.xlane.f32.xlu0 %v1657
  %v1681 = vpop.xlane.xlu0 %1680
  %1682 = vadd.xlane.f32.xlu0 %v1658
  %v1683 = vpop.xlane.xlu0 %1682
  %1684 = vadd.xlane.f32.xlu0 %v1659
  %v1685 = vpop.xlane.xlu0 %1684
  %1686 = vadd.xlane.f32.xlu0 %v1660
  %v1687 = vpop.xlane.xlu0 %1686
  %1688 = vadd.xlane.f32.xlu0 %v1661
  %v1689 = vpop.xlane.xlu0 %1688
  %1690 = vadd.xlane.f32.xlu0 %v1662
  %v1691 = vpop.xlane.xlu0 %1690
  %1692 = vadd.xlane.f32.xlu0 %v1663
  %v1693 = vpop.xlane.xlu0 %1692
  %1694 = vadd.xlane.f32.xlu0 %v1664
  %v1695 = vpop.xlane.xlu0 %1694
  %1696 = vadd.xlane.f32.xlu0 %v1665
  %v1697 = vpop.xlane.xlu0 %1696
  %v1698 = vmax.f32 %v1667, 1e-24
  %v1699 = vmax.f32 %v1669, 1e-24
  %v1700 = vmax.f32 %v1671, 1e-24
  %v1701 = vmax.f32 %v1673, 1e-24
  %v1702 = vmax.f32 %v1675, 1e-24
  %v1703 = vmax.f32 %v1677, 1e-24
  %v1704 = vmax.f32 %v1679, 1e-24
  %v1705 = vmax.f32 %v1681, 1e-24
  %v1706 = vmax.f32 %v1683, 1e-24
  %v1707 = vmax.f32 %v1685, 1e-24
  %v1708 = vmax.f32 %v1687, 1e-24
  %v1709 = vmax.f32 %v1689, 1e-24
  %v1710 = vmax.f32 %v1691, 1e-24
  %v1711 = vmax.f32 %v1693, 1e-24
  %v1712 = vmax.f32 %v1695, 1e-24
  %v1713 = vmax.f32 %v1697, 1e-24
  %v1714 = vrsqrt.pop %v1698
  %v1715 = vrsqrt.pop %v1699
  %v1716 = vrsqrt.pop %v1700
  %v1717 = vrsqrt.pop %v1701
  %v1718 = vrsqrt.pop %v1702
  %v1719 = vrsqrt.pop %v1703
  %v1720 = vrsqrt.pop %v1704
  %v1721 = vrsqrt.pop %v1705
  %v1722 = vrsqrt.pop %v1706
  %v1723 = vrsqrt.pop %v1707
  %v1724 = vrsqrt.pop %v1708
  %v1725 = vrsqrt.pop %v1709
  %v1726 = vrsqrt.pop %v1710
  %v1727 = vrsqrt.pop %v1711
  %v1728 = vrsqrt.pop %v1712
  %v1729 = vrsqrt.pop %v1713
  %s1730 = sld [smem:[#allocation2]]
  %v1731 = vstv %s1730
  %v1732 = vmul.f32 %v1731, 1.442695
  %v1733 = vpow.pop %v1732
  %v1734 = vmul.f32 %v1733, %v1649
  %v1735 = vmul.f32 %v562, %v1734
  %v1736 = vmul.f32 %v1581, %v1714
  %v1737 = vmul.f32 %v1584, %v1715
  %v1738 = vmul.f32 %v1589, %v1716
  %v1739 = vmul.f32 %v1592, %v1717
  %v1740 = vmul.f32 %v1597, %v1718
  %v1741 = vmul.f32 %v1600, %v1719
  %v1742 = vmul.f32 %v1605, %v1720
  %v1743 = vmul.f32 %v1608, %v1721
  %v1744 = vmul.f32 %v1613, %v1722
  %v1745 = vmul.f32 %v1616, %v1723
  %v1746 = vmul.f32 %v1621, %v1724
  %v1747 = vmul.f32 %v1624, %v1725
  %v1748 = vmul.f32 %v1629, %v1726
  %v1749 = vmul.f32 %v1632, %v1727
  %v1750 = vmul.f32 %v1637, %v1728
  %v1751 = vmul.f32 %v1640, %v1729
  %1752 = vmatprep.subr.mxu0 0.0
  %1753 = vmatpush1.xpose.msra.mxu0 %v1736
  %1754 = vmatprep.subr.mxu0 0.0
  %1755 = vmatpush1.xpose.msra.mxu0 %v1737
  %1756 = vmatprep.subr.mxu0 0.0
  %1757 = vmatpush1.xpose.msra.mxu0 %v1738
  %1758 = vmatprep.subr.mxu0 0.0
  %1759 = vmatpush1.xpose.msra.mxu0 %v1739
  %1760 = vmatprep.subr.mxu0 0.0
  %1761 = vmatpush1.xpose.msra.mxu0 %v1740
  %1762 = vmatprep.subr.mxu0 0.0
  %1763 = vmatpush1.xpose.msra.mxu0 %v1741
  %1764 = vmatprep.subr.mxu0 0.0
  %1765 = vmatpush1.xpose.msra.mxu0 %v1742
  %1766 = vmatprep.subr.mxu0 0.0
  %1767 = vmatpush1.xpose.msra.mxu0 %v1743
  %1768 = vmatprep.subr.mxu0 0.0
  %1769 = vmatpush1.xpose.msra.mxu0 %v1744
  %1770 = vmatprep.subr.mxu0 0.0
  %1771 = vmatpush1.xpose.msra.mxu0 %v1745
  %1772 = vmatprep.subr.mxu0 0.0
  %1773 = vmatpush1.xpose.msra.mxu0 %v1746
  %1774 = vmatprep.subr.mxu0 0.0
  %1775 = vmatpush1.xpose.msra.mxu0 %v1747
  %1776 = vmatprep.subr.mxu0 0.0
  %1777 = vmatpush1.xpose.msra.mxu0 %v1748
  %1778 = vmatprep.subr.mxu0 0.0
  %1779 = vmatpush1.xpose.msra.mxu0 %v1749
  %1780 = vmatprep.subr.mxu0 0.0
  %1781 = vmatpush1.xpose.msra.mxu0 %v1750
  %1782 = vmatprep.subr.mxu0 0.0
  %1783 = vmatpush1.xpose.msra.mxu0 %v1751
  %1784 = vmatprep.subr.mxu0 0.0
  %1785 = vmatpush1.xpose.msra.mxu0 0.0
  %1786 = vmatprep.subr.mxu0 0.0
  %1787 = vmatpush1.xpose.msra.mxu0 0.0
  %1788 = vmatprep.subr.mxu0 0.0
  %1789 = vmatpush1.xpose.msra.mxu0 0.0
  %1790 = vmatprep.subr.mxu0 0.0
  %1791 = vmatpush1.xpose.msra.mxu0 0.0
  %1792 = vmatprep.subr.mxu0 0.0
  %1793 = vmatpush1.xpose.msra.mxu0 0.0
  %1794 = vmatprep.subr.mxu0 0.0
  %1795 = vmatpush1.xpose.msra.mxu0 0.0
  %1796 = vmatprep.subr.mxu0 0.0
  %1797 = vmatpush1.xpose.msra.mxu0 0.0
  %1798 = vmatprep.subr.mxu0 0.0
  %1799 = vmatpush1.xpose.msra.mxu0 0.0
  %1800 = vmatprep.subr.mxu0 0.0
  %1801 = vmatpush1.xpose.msra.mxu0 0.0
  %1802 = vmatprep.subr.mxu0 0.0
  %1803 = vmatpush1.xpose.msra.mxu0 0.0
  %1804 = vmatprep.subr.mxu0 0.0
  %1805 = vmatpush1.xpose.msra.mxu0 0.0
  %1806 = vmatprep.subr.mxu0 0.0
  %1807 = vmatpush1.xpose.msra.mxu0 0.0
  %1808 = vmatprep.subr.mxu0 0.0
  %1809 = vmatpush1.xpose.msra.mxu0 0.0
  %1810 = vmatprep.subr.mxu0 0.0
  %1811 = vmatpush1.xpose.msra.mxu0 0.0
  %1812 = vmatprep.subr.mxu0 0.0
  %1813 = vmatpush1.xpose.msra.mxu0 0.0
  %1814 = vmatprep.subr.mxu0 0.0
  %1815 = vmatpush1.xpose.msra.mxu0 0.0
  %1816 = vmatprep.mubr.f32.mxu0 0.0
  %1817 = vmatmul.mubr.f32.gmra.mrb[0].mxu0 %v1735
  %v1818 = vpop.f32.mrb[0].mxu0
  %v1819 = vadd.f32 0.0, %v1818
  %v1820 = vpop.f32.mrb[0].mxu0
  %1821 = vdwg.mxu0
  %1822 = vst [vmem:[%s5] sm:$0x3] %v1819
  // Predicated region
  $region22: #{clip_ret_tta_forward.1} parent=0 // pred_check
    _
  $region23: #{clip_ret_tta_forward.1} parent=0 // pred_check_branch
    %1824 = sbr.rel (0) target = $region25
  $region24: #{clip_ret_tta_forward.1} parent=0 // pred_region
    _
  $region25: #{clip_ret_tta_forward.1} parent=0 // pred_fallthru
    _
  // Predicated region
  $region26: #{clip_ret_tta_forward.1} parent=0 // pred_check
    _
  $region27: #{clip_ret_tta_forward.1} parent=0 // pred_check_branch
    %1826 = sbr.rel (0) target = $region29
  $region28: #{clip_ret_tta_forward.1} parent=0 // pred_region
    _
  $region29: #{clip_ret_tta_forward.1} parent=0 // pred_fallthru
    _

</llo_original>
